<compile_context>
chip_gen: v7x
topology: tpu7x:2x2x1
jax: 0.10.0
libtpu: 0.0.40
codegen_flags: <defaults>
</compile_context>

<pallas_src>
import functools

import jax
import jax.numpy as jnp
from jax.experimental import pallas as pl
from jax.experimental.pallas import tpu as pltpu


def _round_up(n, m):
    return ((n + m - 1) // m) * m


def _vmem_capacity_bytes():
    """Physical VMEM per TensorCore; conservative fallback if query fails."""
    try:
        return int(pltpu.get_tpu_info().vmem_capacity_bytes)
    except Exception:
        return 64 * 2**20  # v7x per-TC size (the tightest generation)


def _choose_tb(B):
    """MXU-aligned batch tile that keeps the grid >= 2 steps when possible."""
    if B <= 16:
        return _round_up(B, 8)
    for cand in (512, 256, 128, 64, 32, 16, 8):
        if B >= 2 * cand:          # at least 2 grid steps (v7x megacore)
            return cand
    return 8


# --------------------------------------------------------------------------
# Kernel
# --------------------------------------------------------------------------
def residual_net_kernel(
    x_ref,                                  # (tb, IN_P)  bf16
    wi_ref, bi_ref,                         # initial_layer   (bf16 / f32)
    w1a_ref, b1a_ref, w1b_ref, b1b_ref,     # block 0
    w2a_ref, b2a_ref, w2b_ref, b2b_ref,     # block 1
    wf_ref, bf_ref,                         # final_layer
    o_ref,                                  # (tb, OUT_P)
):
    x = x_ref[...]                                                    # bf16

    # initial layer: bf16 x bf16 -> f32 accumulate on MXU
    h = jnp.dot(x, wi_ref[...], preferred_element_type=jnp.float32) + bi_ref[...]

    def res_block(h, wa, ba, wb, bb):
        # relu fused with the bf16 cast (single expression per matmul input);
        # residual accumulator h stays f32.
        t = jnp.dot(jnp.maximum(h, 0.0).astype(jnp.bfloat16), wa,
                    preferred_element_type=jnp.float32) + ba          # linear_layers[0]
        # dropout(p=0.0) == identity
        t = jnp.dot(jnp.maximum(t, 0.0).astype(jnp.bfloat16), wb,
                    preferred_element_type=jnp.float32) + bb          # linear_layers[1]
        return h + t                                                  # residual add (f32)

    h = res_block(h, w1a_ref[...], b1a_ref[...], w1b_ref[...], b1b_ref[...])
    h = res_block(h, w2a_ref[...], b2a_ref[...], w2b_ref[...], b2b_ref[...])

    out = jnp.dot(jnp.maximum(h, -jnp.inf).astype(jnp.bfloat16) if False else
                  h.astype(jnp.bfloat16), wf_ref[...],
                  preferred_element_type=jnp.float32) + bf_ref[...]
    o_ref[...] = out.astype(o_ref.dtype)


# --------------------------------------------------------------------------
# One-time parameter preparation (hoisted out of the per-call hot path)
# --------------------------------------------------------------------------
def _pad2(a, rows, cols, dtype):
    out = jnp.zeros((rows, cols), dtype)
    return out.at[: a.shape[0], : a.shape[1]].set(a.astype(dtype))


def prepare_padded_params(params):
    """Pad feature dims to multiples of 128 and cast weights to bf16. Run ONCE."""
    in_features = params["wi"].shape[0]
    hidden = params["wi"].shape[1]
    out_features = params["wf"].shape[1]

    IN_P = _round_up(in_features, 128)
    H_P = _round_up(hidden, 128)
    OUT_P = _round_up(out_features, 128)

    padded = dict(
        wi=_pad2(params["wi"], IN_P, H_P, jnp.bfloat16),
        bi=_pad2(params["bi"], 1, H_P, jnp.float32),
        w1a=_pad2(params["w1a"], H_P, H_P, jnp.bfloat16),
        b1a=_pad2(params["b1a"], 1, H_P, jnp.float32),
        w1b=_pad2(params["w1b"], H_P, H_P, jnp.bfloat16),
        b1b=_pad2(params["b1b"], 1, H_P, jnp.float32),
        w2a=_pad2(params["w2a"], H_P, H_P, jnp.bfloat16),
        b2a=_pad2(params["b2a"], 1, H_P, jnp.float32),
        w2b=_pad2(params["w2b"], H_P, H_P, jnp.bfloat16),
        b2b=_pad2(params["b2b"], 1, H_P, jnp.float32),
        wf=_pad2(params["wf"], H_P, OUT_P, jnp.bfloat16),
        bf=_pad2(params["bf"], 1, OUT_P, jnp.float32),
    )
    meta = dict(in_features=in_features, hidden=hidden, out_features=out_features,
                IN_P=IN_P, H_P=H_P, OUT_P=OUT_P)
    return padded, meta


# --------------------------------------------------------------------------
# Pallas-backed forward (hot path: takes pre-padded params)
# --------------------------------------------------------------------------
@functools.partial(jax.jit, static_argnames=("in_features", "out_features", "tb",
                                              "out_dtype"))
def residual_net_forward_pallas(x, padded, *, in_features, out_features,
                                tb=None, out_dtype=jnp.float32):
    """x: [B, in_features] f32. padded: dict from prepare_padded_params."""
    B = x.shape[0]
    IN_P, H_P = padded["wi"].shape
    OUT_P = padded["wf"].shape[1]

    if tb is None:
        tb = _choose_tb(B)
    B_P = _round_up(B, tb)
    num_tiles = B_P // tb

    # Only the activations are padded/cast per call (cheap, batch-sized).
    x_p = jnp.zeros((B_P, IN_P), jnp.bfloat16).at[:B, :in_features].set(
        x.astype(jnp.bfloat16))

    args = (x_p,
            padded["wi"], padded["bi"],
            padded["w1a"], padded["b1a"], padded["w1b"], padded["b1b"],
            padded["w2a"], padded["b2a"], padded["w2b"], padded["b2b"],
            padded["wf"], padded["bf"])

    def resident(shape):
        # Full-array block, constant index -> fetched once; single-buffered so
        # it occupies only 1x its size in VMEM (matters on v7x's 64 MiB/TC).
        return pl.BlockSpec(shape, lambda i: (0,) * len(shape),
                            pipeline_mode=pl.Buffered(1))

    in_specs = [pl.BlockSpec((tb, IN_P), lambda i: (i, 0))] + [
        resident(a.shape) for a in args[1:]
    ]
    out_spec = pl.BlockSpec((tb, OUT_P), lambda i: (i, 0))

    # ---- VMEM budget (generation-aware) ----
    out_bytes_per_elem = jnp.dtype(out_dtype).itemsize
    weight_bytes = 2 * (IN_P * H_P + 4 * H_P * H_P + H_P * OUT_P)    # bf16, 1x buffered
    bias_bytes = 4 * 8 * (5 * H_P + OUT_P)                           # (8,128)-padded f32, 1x
    act_bytes = 2 * tb * IN_P * 2 + 2 * tb * OUT_P * out_bytes_per_elem  # 2x pipelined x / out
    scratch_bytes = 4 * tb * H_P * 4                                 # live f32 intermediates
    vmem_needed = weight_bytes + bias_bytes + act_bytes + scratch_bytes

    vmem_cap = int(0.75 * _vmem_capacity_bytes())                    # <= ~48 MiB on v7x
    vmem_limit = int(min(vmem_cap, max(16 * 2**20, int(1.25 * vmem_needed))))
    # TODO(synk): if vmem_needed > vmem_cap (huge hidden), switch block weights
    # to streaming (memory_space=pl.ANY + emit_pipeline) instead of resident.

    flops = 2 * B_P * (IN_P * H_P + 4 * H_P * H_P + H_P * OUT_P)
    bytes_accessed = (x_p.size * 2 + weight_bytes + bias_bytes
                      + B_P * OUT_P * out_bytes_per_elem)

    out_p = pl.pallas_call(
        residual_net_kernel,
        out_shape=jax.ShapeDtypeStruct((B_P, OUT_P), out_dtype),
        grid_spec=pltpu.PrefetchScalarGridSpec(
            num_scalar_prefetch=0,
            grid=(num_tiles,),
            in_specs=in_specs,
            out_specs=out_spec,
        ),
        compiler_params=pltpu.CompilerParams(
            dimension_semantics=("parallel",),
            vmem_limit_bytes=vmem_limit,
        ),
        cost_estimate=pl.CostEstimate(
            flops=flops, transcendentals=0, bytes_accessed=bytes_accessed
        ),
    )(*args)

    return out_p[:B, :out_features]


# --------------------------------------------------------------------------
# Pure-JAX reference + size-aware dispatcher
# --------------------------------------------------------------------------
def residual_net_reference(x, params):
    """Pure-JAX f32 reference mirroring the PyTorch forward."""
    h = x @ params["wi"] + params["bi"]
    for a, ba, b, bb in (("w1a", "b1a", "w1b", "b1b"), ("w2a", "b2a", "w2b", "b2b")):
        t = jax.nn.relu(h)
        t = t @ params[a] + params[ba]
        t = jax.nn.relu(t)
        t = t @ params[b] + params[bb]
        h = h + t
    return h @ params["wf"] + params["bf"]


def residual_net_forward(x, params, padded=None, meta=None, *,
                         min_pallas_rows=64, out_dtype=jnp.float32):
    """Dispatcher: plain XLA for degenerate tiny shapes, Pallas otherwise."""
    B = x.shape[0]
    if B < min_pallas_rows:
        return residual_net_reference(x, params)
    if padded is None or meta is None:
        padded, meta = prepare_padded_params(params)
    return residual_net_forward_pallas(
        x, padded, in_features=meta["in_features"],
        out_features=meta["out_features"], out_dtype=out_dtype)


# --------------------------------------------------------------------------
# Parameter construction (deterministic, matches module shapes)
# --------------------------------------------------------------------------
def make_params(key, in_features, hidden_features, out_features):
    """Linear(fin,fout) weights stored as [fin,fout] (transpose of PyTorch),
    bias as [1,fout]."""
    ks = jax.random.split(key, 12)

    def lin(kw, kb, fin, fout, scale=None):
        s = scale if scale is not None else 1.0 / jnp.sqrt(fin)
        w = jax.random.uniform(kw, (fin, fout), jnp.float32, -s, s)
        b = jax.random.uniform(kb, (1, fout), jnp.float32, -s, s)
        return w, b

    wi, bi = lin(ks[0], ks[1], in_features, hidden_features)
    w1a, b1a = lin(ks[2], ks[3], hidden_features, hidden_features)
    # zero_initialization=True -> last linear of each block uniform(-0.001, 0.001)
    w1b, b1b = lin(ks[4], ks[5], hidden_features, hidden_features, scale=0.001)
    w2a, b2a = lin(ks[6], ks[7], hidden_features, hidden_features)
    w2b, b2b = lin(ks[8], ks[9], hidden_features, hidden_features, scale=0.001)
    wf, bf = lin(ks[10], ks[11], hidden_features, out_features)

    return dict(wi=wi, bi=bi, w1a=w1a, b1a=b1a, w1b=w1b, b1b=b1b,
                w2a=w2a, b2a=b2a, w2b=w2b, b2b=b2b, wf=wf, bf=bf)


if __name__ == "__main__":
    key = jax.random.PRNGKey(0)
    k_x, k_p = jax.random.split(key)

    batch = 64            # 2 grid steps with tb=32 (exercises resident-weight reuse)
    in_features = 8
    hidden_features = 32
    out_features = 16

    x = jax.random.normal(k_x, (batch, in_features), jnp.float32)
    params = make_params(k_p, in_features, hidden_features, out_features)

    # One-time weight preparation (hoisted out of the per-call hot path).
    padded, meta = prepare_padded_params(params)

    out = residual_net_forward_pallas(
        x, padded, in_features=in_features, out_features=out_features)
    out = jax.block_until_ready(out)

    ref = residual_net_reference(x, params)
    assert out.shape == (batch, out_features)
    # bf16 MXU operands with f32 accumulation -> bf16-appropriate tolerance.
    assert jnp.allclose(out, ref, atol=2e-2, rtol=2e-2), "mismatch vs pure-JAX reference"

    print("KERNEL_OK")
</pallas_src>

<mosaic_0001>
module attributes {stable_mosaic.version = 11 : i64} {
  func.func @residual_net_kernel(%arg0: i32, %arg1: memref<32x128xbf16, #tpu.memory_space<vmem>>, %arg2: memref<128x128xbf16, #tpu.memory_space<vmem>>, %arg3: memref<1x128xf32, #tpu.memory_space<vmem>>, %arg4: memref<128x128xbf16, #tpu.memory_space<vmem>>, %arg5: memref<1x128xf32, #tpu.memory_space<vmem>>, %arg6: memref<128x128xbf16, #tpu.memory_space<vmem>>, %arg7: memref<1x128xf32, #tpu.memory_space<vmem>>, %arg8: memref<128x128xbf16, #tpu.memory_space<vmem>>, %arg9: memref<1x128xf32, #tpu.memory_space<vmem>>, %arg10: memref<128x128xbf16, #tpu.memory_space<vmem>>, %arg11: memref<1x128xf32, #tpu.memory_space<vmem>>, %arg12: memref<128x128xbf16, #tpu.memory_space<vmem>>, %arg13: memref<1x128xf32, #tpu.memory_space<vmem>>, %arg14: memref<32x128xf32, #tpu.memory_space<vmem>>) attributes {dimension_semantics = [#tpu.dimension_semantics<parallel>], iteration_bounds = array<i64: 2>, scalar_prefetch = 0 : i64, scratch_operands = 0 : i64, tpu.core_type = #tpu.core_type<tc>, window_params = [{transform_indices = @transform_0, window_bounds = array<i64: 32, 128>}, {pipeline_mode = #tpu.pipeline_mode<synchronous>, transform_indices = @transform_1, window_bounds = array<i64: 128, 128>}, {pipeline_mode = #tpu.pipeline_mode<synchronous>, transform_indices = @transform_2, window_bounds = array<i64: 1, 128>}, {pipeline_mode = #tpu.pipeline_mode<synchronous>, transform_indices = @transform_3, window_bounds = array<i64: 128, 128>}, {pipeline_mode = #tpu.pipeline_mode<synchronous>, transform_indices = @transform_4, window_bounds = array<i64: 1, 128>}, {pipeline_mode = #tpu.pipeline_mode<synchronous>, transform_indices = @transform_5, window_bounds = array<i64: 128, 128>}, {pipeline_mode = #tpu.pipeline_mode<synchronous>, transform_indices = @transform_6, window_bounds = array<i64: 1, 128>}, {pipeline_mode = #tpu.pipeline_mode<synchronous>, transform_indices = @transform_7, window_bounds = array<i64: 128, 128>}, {pipeline_mode = #tpu.pipeline_mode<synchronous>, transform_indices = @transform_8, window_bounds = array<i64: 1, 128>}, {pipeline_mode = #tpu.pipeline_mode<synchronous>, transform_indices = @transform_9, window_bounds = array<i64: 128, 128>}, {pipeline_mode = #tpu.pipeline_mode<synchronous>, transform_indices = @transform_10, window_bounds = array<i64: 1, 128>}, {pipeline_mode = #tpu.pipeline_mode<synchronous>, transform_indices = @transform_11, window_bounds = array<i64: 128, 128>}, {pipeline_mode = #tpu.pipeline_mode<synchronous>, transform_indices = @transform_12, window_bounds = array<i64: 1, 128>}, {transform_indices = @transform_13, window_bounds = array<i64: 32, 128>}]} {
    %c0 = arith.constant 0 : index
    %c0_0 = arith.constant 0 : index
    %0 = vector.load %arg1[%c0, %c0_0] : memref<32x128xbf16, #tpu.memory_space<vmem>>, vector<32x128xbf16>
    %c0_1 = arith.constant 0 : index
    %c0_2 = arith.constant 0 : index
    %1 = vector.load %arg2[%c0_1, %c0_2] : memref<128x128xbf16, #tpu.memory_space<vmem>>, vector<128x128xbf16>
    %cst = arith.constant dense<0.000000e+00> : vector<32x128xf32>
    %2 = tpu.matmul %0, %1, %cst {dimension_numbers = #tpu.dot_dimension_numbers<[1], [0], [0], [1], [0, 0, 1, 1], [], []>} : vector<32x128xbf16>, vector<128x128xbf16>, vector<32x128xf32> -> vector<32x128xf32>
    %c0_3 = arith.constant 0 : index
    %c0_4 = arith.constant 0 : index
    %3 = vector.load %arg3[%c0_3, %c0_4] : memref<1x128xf32, #tpu.memory_space<vmem>>, vector<1x128xf32>
    %4 = vector.broadcast %3 : vector<1x128xf32> to vector<32x128xf32>
    %5 = arith.addf %2, %4 : vector<32x128xf32>
    %c0_5 = arith.constant 0 : index
    %c0_6 = arith.constant 0 : index
    %6 = vector.load %arg4[%c0_5, %c0_6] : memref<128x128xbf16, #tpu.memory_space<vmem>>, vector<128x128xbf16>
    %c0_7 = arith.constant 0 : index
    %c0_8 = arith.constant 0 : index
    %7 = vector.load %arg5[%c0_7, %c0_8] : memref<1x128xf32, #tpu.memory_space<vmem>>, vector<1x128xf32>
    %c0_9 = arith.constant 0 : index
    %c0_10 = arith.constant 0 : index
    %8 = vector.load %arg6[%c0_9, %c0_10] : memref<128x128xbf16, #tpu.memory_space<vmem>>, vector<128x128xbf16>
    %c0_11 = arith.constant 0 : index
    %c0_12 = arith.constant 0 : index
    %9 = vector.load %arg7[%c0_11, %c0_12] : memref<1x128xf32, #tpu.memory_space<vmem>>, vector<1x128xf32>
    %cst_13 = arith.constant 0.000000e+00 : f32
    %10 = vector.broadcast %cst_13 : f32 to vector<32x128xf32>
    %11 = arith.maximumf %5, %10 : vector<32x128xf32>
    %12 = arith.truncf %11 : vector<32x128xf32> to vector<32x128xbf16>
    %cst_14 = arith.constant dense<0.000000e+00> : vector<32x128xf32>
    %13 = tpu.matmul %12, %6, %cst_14 {dimension_numbers = #tpu.dot_dimension_numbers<[1], [0], [0], [1], [0, 0, 1, 1], [], []>} : vector<32x128xbf16>, vector<128x128xbf16>, vector<32x128xf32> -> vector<32x128xf32>
    %14 = vector.broadcast %7 : vector<1x128xf32> to vector<32x128xf32>
    %15 = arith.addf %13, %14 : vector<32x128xf32>
    %cst_15 = arith.constant 0.000000e+00 : f32
    %16 = vector.broadcast %cst_15 : f32 to vector<32x128xf32>
    %17 = arith.maximumf %15, %16 : vector<32x128xf32>
    %18 = arith.truncf %17 : vector<32x128xf32> to vector<32x128xbf16>
    %cst_16 = arith.constant dense<0.000000e+00> : vector<32x128xf32>
    %19 = tpu.matmul %18, %8, %cst_16 {dimension_numbers = #tpu.dot_dimension_numbers<[1], [0], [0], [1], [0, 0, 1, 1], [], []>} : vector<32x128xbf16>, vector<128x128xbf16>, vector<32x128xf32> -> vector<32x128xf32>
    %20 = vector.broadcast %9 : vector<1x128xf32> to vector<32x128xf32>
    %21 = arith.addf %19, %20 : vector<32x128xf32>
    %22 = arith.addf %5, %21 : vector<32x128xf32>
    %c0_17 = arith.constant 0 : index
    %c0_18 = arith.constant 0 : index
    %23 = vector.load %arg8[%c0_17, %c0_18] : memref<128x128xbf16, #tpu.memory_space<vmem>>, vector<128x128xbf16>
    %c0_19 = arith.constant 0 : index
    %c0_20 = arith.constant 0 : index
    %24 = vector.load %arg9[%c0_19, %c0_20] : memref<1x128xf32, #tpu.memory_space<vmem>>, vector<1x128xf32>
    %c0_21 = arith.constant 0 : index
    %c0_22 = arith.constant 0 : index
    %25 = vector.load %arg10[%c0_21, %c0_22] : memref<128x128xbf16, #tpu.memory_space<vmem>>, vector<128x128xbf16>
    %c0_23 = arith.constant 0 : index
    %c0_24 = arith.constant 0 : index
    %26 = vector.load %arg11[%c0_23, %c0_24] : memref<1x128xf32, #tpu.memory_space<vmem>>, vector<1x128xf32>
    %cst_25 = arith.constant 0.000000e+00 : f32
    %27 = vector.broadcast %cst_25 : f32 to vector<32x128xf32>
    %28 = arith.maximumf %22, %27 : vector<32x128xf32>
    %29 = arith.truncf %28 : vector<32x128xf32> to vector<32x128xbf16>
    %cst_26 = arith.constant dense<0.000000e+00> : vector<32x128xf32>
    %30 = tpu.matmul %29, %23, %cst_26 {dimension_numbers = #tpu.dot_dimension_numbers<[1], [0], [0], [1], [0, 0, 1, 1], [], []>} : vector<32x128xbf16>, vector<128x128xbf16>, vector<32x128xf32> -> vector<32x128xf32>
    %31 = vector.broadcast %24 : vector<1x128xf32> to vector<32x128xf32>
    %32 = arith.addf %30, %31 : vector<32x128xf32>
    %cst_27 = arith.constant 0.000000e+00 : f32
    %33 = vector.broadcast %cst_27 : f32 to vector<32x128xf32>
    %34 = arith.maximumf %32, %33 : vector<32x128xf32>
    %35 = arith.truncf %34 : vector<32x128xf32> to vector<32x128xbf16>
    %cst_28 = arith.constant dense<0.000000e+00> : vector<32x128xf32>
    %36 = tpu.matmul %35, %25, %cst_28 {dimension_numbers = #tpu.dot_dimension_numbers<[1], [0], [0], [1], [0, 0, 1, 1], [], []>} : vector<32x128xbf16>, vector<128x128xbf16>, vector<32x128xf32> -> vector<32x128xf32>
    %37 = vector.broadcast %26 : vector<1x128xf32> to vector<32x128xf32>
    %38 = arith.addf %36, %37 : vector<32x128xf32>
    %39 = arith.addf %22, %38 : vector<32x128xf32>
    %40 = arith.truncf %39 : vector<32x128xf32> to vector<32x128xbf16>
    %c0_29 = arith.constant 0 : index
    %c0_30 = arith.constant 0 : index
    %41 = vector.load %arg12[%c0_29, %c0_30] : memref<128x128xbf16, #tpu.memory_space<vmem>>, vector<128x128xbf16>
    %cst_31 = arith.constant dense<0.000000e+00> : vector<32x128xf32>
    %42 = tpu.matmul %40, %41, %cst_31 {dimension_numbers = #tpu.dot_dimension_numbers<[1], [0], [0], [1], [0, 0, 1, 1], [], []>} : vector<32x128xbf16>, vector<128x128xbf16>, vector<32x128xf32> -> vector<32x128xf32>
    %c0_32 = arith.constant 0 : index
    %c0_33 = arith.constant 0 : index
    %43 = vector.load %arg13[%c0_32, %c0_33] : memref<1x128xf32, #tpu.memory_space<vmem>>, vector<1x128xf32>
    %44 = vector.broadcast %43 : vector<1x128xf32> to vector<32x128xf32>
    %45 = arith.addf %42, %44 : vector<32x128xf32>
    %c0_34 = arith.constant 0 : index
    %c0_35 = arith.constant 0 : index
    %46 = vector.load %arg14[%c0_34, %c0_35] : memref<32x128xf32, #tpu.memory_space<vmem>>, vector<32x128xf32>
    tpu.vector_store %arg14[%c0_34, %c0_35], %45 {strides = array<i32>} : memref<32x128xf32, #tpu.memory_space<vmem>>, vector<32x128xf32>,
    return
  }
  func.func @transform_0(%arg0: i32) -> (i32, i32) {
    %c0_i32 = arith.constant 0 : i32
    %c0_i32_0 = arith.constant 0 : i32
    return %arg0, %c0_i32 : i32, i32
  }
  func.func @transform_1(%arg0: i32) -> (i32, i32) {
    %c0_i32 = arith.constant 0 : i32
    %c0_i32_0 = arith.constant 0 : i32
    %c0_i32_1 = arith.constant 0 : i32
    return %c0_i32, %c0_i32_0 : i32, i32
  }
  func.func @transform_2(%arg0: i32) -> (i32, i32) {
    %c0_i32 = arith.constant 0 : i32
    %c0_i32_0 = arith.constant 0 : i32
    %c0_i32_1 = arith.constant 0 : i32
    return %c0_i32, %c0_i32_0 : i32, i32
  }
  func.func @transform_3(%arg0: i32) -> (i32, i32) {
    %c0_i32 = arith.constant 0 : i32
    %c0_i32_0 = arith.constant 0 : i32
    %c0_i32_1 = arith.constant 0 : i32
    return %c0_i32, %c0_i32_0 : i32, i32
  }
  func.func @transform_4(%arg0: i32) -> (i32, i32) {
    %c0_i32 = arith.constant 0 : i32
    %c0_i32_0 = arith.constant 0 : i32
    %c0_i32_1 = arith.constant 0 : i32
    return %c0_i32, %c0_i32_0 : i32, i32
  }
  func.func @transform_5(%arg0: i32) -> (i32, i32) {
    %c0_i32 = arith.constant 0 : i32
    %c0_i32_0 = arith.constant 0 : i32
    %c0_i32_1 = arith.constant 0 : i32
    return %c0_i32, %c0_i32_0 : i32, i32
  }
  func.func @transform_6(%arg0: i32) -> (i32, i32) {
    %c0_i32 = arith.constant 0 : i32
    %c0_i32_0 = arith.constant 0 : i32
    %c0_i32_1 = arith.constant 0 : i32
    return %c0_i32, %c0_i32_0 : i32, i32
  }
  func.func @transform_7(%arg0: i32) -> (i32, i32) {
    %c0_i32 = arith.constant 0 : i32
    %c0_i32_0 = arith.constant 0 : i32
    %c0_i32_1 = arith.constant 0 : i32
    return %c0_i32, %c0_i32_0 : i32, i32
  }
  func.func @transform_8(%arg0: i32) -> (i32, i32) {
    %c0_i32 = arith.constant 0 : i32
    %c0_i32_0 = arith.constant 0 : i32
    %c0_i32_1 = arith.constant 0 : i32
    return %c0_i32, %c0_i32_0 : i32, i32
  }
  func.func @transform_9(%arg0: i32) -> (i32, i32) {
    %c0_i32 = arith.constant 0 : i32
    %c0_i32_0 = arith.constant 0 : i32
    %c0_i32_1 = arith.constant 0 : i32
    return %c0_i32, %c0_i32_0 : i32, i32
  }
  func.func @transform_10(%arg0: i32) -> (i32, i32) {
    %c0_i32 = arith.constant 0 : i32
    %c0_i32_0 = arith.constant 0 : i32
    %c0_i32_1 = arith.constant 0 : i32
    return %c0_i32, %c0_i32_0 : i32, i32
  }
  func.func @transform_11(%arg0: i32) -> (i32, i32) {
    %c0_i32 = arith.constant 0 : i32
    %c0_i32_0 = arith.constant 0 : i32
    %c0_i32_1 = arith.constant 0 : i32
    return %c0_i32, %c0_i32_0 : i32, i32
  }
  func.func @transform_12(%arg0: i32) -> (i32, i32) {
    %c0_i32 = arith.constant 0 : i32
    %c0_i32_0 = arith.constant 0 : i32
    %c0_i32_1 = arith.constant 0 : i32
    return %c0_i32, %c0_i32_0 : i32, i32
  }
  func.func @transform_13(%arg0: i32) -> (i32, i32) {
    %c0_i32 = arith.constant 0 : i32
    %c0_i32_0 = arith.constant 0 : i32
    return %arg0, %c0_i32 : i32, i32
  }
}

</mosaic_0001>

<llo_original>
// kernel: residual_net_forward_pallas.1
$region0: #{residual_net_forward_pallas.1}
  #allocation0 [shape = 'u32[]', space=smem, size = 0x4, offset = 0x4, fixed_abs, tag = 'smem constant byte address 0x4 - core index']
  #allocation1 [shape = 'u32[144,128]{1,0:T(1,128)}', space=vmem, size = 0x12000, scoped, tag = 'internal scratch']
  %s0 = inlined_call_operand.vmem [shape: bf16[64,128], index: 0, kind: input, shape index: {}]
  %s1 = inlined_call_operand.vmem [shape: bf16[128,128], index: 1, kind: input, shape index: {}]
  %s2 = inlined_call_operand.vmem [shape: f32[1,128], index: 2, kind: input, shape index: {}]
  %s3 = inlined_call_operand.vmem [shape: bf16[128,128], index: 3, kind: input, shape index: {}]
  %s4 = inlined_call_operand.hbm [shape: f32[1,128], index: 4, kind: input, shape index: {}]
  %s5 = inlined_call_operand.vmem [shape: bf16[128,128], index: 5, kind: input, shape index: {}]
  %s6 = inlined_call_operand.hbm [shape: f32[1,128], index: 6, kind: input, shape index: {}]
  %s7 = inlined_call_operand.hbm [shape: bf16[128,128], index: 7, kind: input, shape index: {}]
  %s8 = inlined_call_operand.hbm [shape: f32[1,128], index: 8, kind: input, shape index: {}]
  %s9 = inlined_call_operand.hbm [shape: bf16[128,128], index: 9, kind: input, shape index: {}]
  %s10 = inlined_call_operand.vmem [shape: f32[1,128], index: 10, kind: input, shape index: {}]
  %s11 = inlined_call_operand.hbm [shape: bf16[128,128], index: 11, kind: input, shape index: {}]
  %s12 = inlined_call_operand.vmem [shape: f32[1,128], index: 12, kind: input, shape index: {}]
  %s13 = inlined_call_operand.vmem [shape: f32[64,128], index: 13, kind: output, shape index: {}]
  %s14 = sld [smem:[#allocation0]]
  $region109: #{residual_net_forward_pallas.1} parent=0
    _
  %s16 = ssub.s32 1, %s14
  %s17 = scalar_select 0, %s16, %s14
  $region1: #{residual_net_forward_pallas.1} parent=0
    #allocation2 [shape = 'u8[512]{0}', space=vmem, size = 0x400, scoped, tag = 'input window, operand 4, single buffered']
    #allocation3 [shape = 's32[2]{0}', space=sflag, size = 0x8, scoped, tag = 'scoped memory for residual_net_forward_pallas.1']
    #allocation4 [shape = 'u8[512]{0}', space=vmem, size = 0x400, scoped, tag = 'input window, operand 6, single buffered']
    #allocation5 [shape = 's32[1]{0}', space=sflag, size = 0x4, scoped, tag = 'scoped memory for residual_net_forward_pallas.1']
    #allocation6 [shape = 'u8[32768]{0}', space=vmem, size = 0x8000, scoped, tag = 'input window, operand 7, single buffered']
    #allocation7 [shape = 'u8[512]{0}', space=vmem, size = 0x400, scoped, tag = 'input window, operand 8, single buffered']
    #allocation8 [shape = 's32[1]{0}', space=sflag, size = 0x4, scoped, tag = 'scoped memory for residual_net_forward_pallas.1']
    #allocation9 [shape = 'u8[32768]{0}', space=vmem, size = 0x8000, scoped, tag = 'input window, operand 9, single buffered']
    #allocation10 [shape = 'u8[32768]{0}', space=vmem, size = 0x8000, scoped, tag = 'input window, operand 11, single buffered']
    #allocation11 [shape = 's32[1]{0}', space=sflag, size = 0x4, scoped, tag = 'scoped memory for residual_net_forward_pallas.1']
    %18 = vsyncpa [#allocation3], 0
    %19 = vsyncpa [#allocation5], 0
    %20 = vsyncpa [#allocation8], 0
    %21 = vsyncpa [#allocation11], 0
    loop: start=0, step=1, limit=4
    $region2: #{residual_net_forward_pallas.1} parent=1 // loop_pre_header
      _
    $region3: #{residual_net_forward_pallas.1} parent=1 // loop_header
      %s23 = sphi 0, %s27
      %p24 = scmp.ge.s32.totalorder %s23, 4
      %s33 = sphi 0, %s35
      %s36 = sphi 0, %s33
      %s37 = sphi 0, %s36
      %s53 = sphi 0, %s37
      %s57 = sphi 0, %s57
      %s59 = sphi 0, %s57
      %s60 = sphi 0, %s59
      %s74 = sphi 0, %s60
      %s78 = sphi 0, %s78
      %s80 = sphi 0, %s78
      %s81 = sphi 0, %s80
      %s95 = sphi 0, %s81
      %s99 = sphi 0, %s99
      %s101 = sphi 0, %s99
      %s102 = sphi 0, %s101
      %s116 = sphi 0, %s102
      %s120 = sphi 0, %s120
      %s122 = sphi 0, %s120
      %s123 = sphi 0, %s122
      %s137 = sphi 0, %s123
      %s141 = sphi 0, %s141
      %s143 = sphi 0, %s141
      %s144 = sphi 0, %s143
      %s158 = sphi 0, %s144
      %s162 = sphi 0, %s162
      %s164 = sphi 0, %s162
      %s165 = sphi 0, %s164
      %s179 = sphi 0, %s165
      %s183 = sphi 0, %s183
      %s185 = sphi 0, %s183
      %s186 = sphi 0, %s185
      %s200 = sphi 0, %s186
      %s204 = sphi 0, %s204
      %s206 = sphi 0, %s204
      %s207 = sphi 0, %s206
      %s221 = sphi 0, %s207
      %s225 = sphi 0, %s225
      %s227 = sphi 0, %s225
      %s228 = sphi 0, %s227
      %s242 = sphi 0, %s228
      %s246 = sphi 0, %s246
      %s248 = sphi 0, %s246
      %s249 = sphi 0, %s248
      %s263 = sphi 0, %s249
      %s267 = sphi 0, %s267
      %s269 = sphi 0, %s267
      %s270 = sphi 0, %s269
      %s284 = sphi 0, %s270
      %s288 = sphi 0, %s288
      %s290 = sphi 0, %s288
      %s291 = sphi 0, %s290
      %s305 = sphi 0, %s291
      %s311 = sphi 0, %s313
      %s314 = sphi 0, %s311
      %s315 = sphi 0, %s314
      %s331 = sphi 0, %s315
    $region4: #{residual_net_forward_pallas.1} parent=1 // loop_header_branch
      %26 = sbr.rel (%p24) target = $region8
    $region5: #{residual_net_forward_pallas.1} parent=1 // loop_body
      %s28 = ssub.s32 %s23, 1
      %s29 = ssub.s32 %s23, 2
      %s30 = sadd.s32 %s23, 1
      %s31 = ssub.s32 %s23, %s30
      %p32 = scmp.eq.s32.totalorder %s31, 0
      %s34 = sadd.s32 %s33, 1
      %s35 = scalar_select %p32, %s33, %s34
      %p38 = pneg %p32
      %p39 = scmp.eq.s32.totalorder %s23, 1
      %p40 = por %p38, %p39
      %p41 = scmp.ne.s32.totalorder %s33, %s36
      %p42 = scmp.eq.s32.totalorder %s23, 0
      %p43 = por %p41, %p42
      %p44 = scmp.ne.s32.totalorder %s33, %s36
      %p45 = scmp.eq.s32.totalorder %s28, 1
      %p46 = por %p44, %p45
      %p47 = scmp.ne.s32.totalorder %s36, %s37
      %p48 = scmp.eq.s32.totalorder %s28, 0
      %p49 = por %p47, %p48
      %p50 = scmp.ne.s32.totalorder %s36, %s37
      %p51 = scmp.eq.s32.totalorder %s29, 1
      %p52 = por %p50, %p51
      %p54 = scmp.ne.s32.totalorder %s37, %s53
      %p55 = scmp.eq.s32.totalorder %s29, 0
      %p56 = por %p54, %p55
      %s58 = sadd.s32 %s57, 1
      %p61 = scmp.eq.s32.totalorder %s23, 1
      %p62 = scmp.ne.s32.totalorder %s57, %s59
      %p63 = scmp.eq.s32.totalorder %s23, 0
      %p64 = por %p62, %p63
      %p65 = scmp.ne.s32.totalorder %s57, %s59
      %p66 = scmp.eq.s32.totalorder %s28, 1
      %p67 = por %p65, %p66
      %p68 = scmp.ne.s32.totalorder %s59, %s60
      %p69 = scmp.eq.s32.totalorder %s28, 0
      %p70 = por %p68, %p69
      %p71 = scmp.ne.s32.totalorder %s59, %s60
      %p72 = scmp.eq.s32.totalorder %s29, 1
      %p73 = por %p71, %p72
      %p75 = scmp.ne.s32.totalorder %s60, %s74
      %p76 = scmp.eq.s32.totalorder %s29, 0
      %p77 = por %p75, %p76
      %s79 = sadd.s32 %s78, 1
      %p82 = scmp.eq.s32.totalorder %s23, 1
      %p83 = scmp.ne.s32.totalorder %s78, %s80
      %p84 = scmp.eq.s32.totalorder %s23, 0
      %p85 = por %p83, %p84
      %p86 = scmp.ne.s32.totalorder %s78, %s80
      %p87 = scmp.eq.s32.totalorder %s28, 1
      %p88 = por %p86, %p87
      %p89 = scmp.ne.s32.totalorder %s80, %s81
      %p90 = scmp.eq.s32.totalorder %s28, 0
      %p91 = por %p89, %p90
      %p92 = scmp.ne.s32.totalorder %s80, %s81
      %p93 = scmp.eq.s32.totalorder %s29, 1
      %p94 = por %p92, %p93
      %p96 = scmp.ne.s32.totalorder %s81, %s95
      %p97 = scmp.eq.s32.totalorder %s29, 0
      %p98 = por %p96, %p97
      %s100 = sadd.s32 %s99, 1
      %p103 = scmp.eq.s32.totalorder %s23, 1
      %p104 = scmp.ne.s32.totalorder %s99, %s101
      %p105 = scmp.eq.s32.totalorder %s23, 0
      %p106 = por %p104, %p105
      %p107 = scmp.ne.s32.totalorder %s99, %s101
      %p108 = scmp.eq.s32.totalorder %s28, 1
      %p109 = por %p107, %p108
      %p110 = scmp.ne.s32.totalorder %s101, %s102
      %p111 = scmp.eq.s32.totalorder %s28, 0
      %p112 = por %p110, %p111
      %p113 = scmp.ne.s32.totalorder %s101, %s102
      %p114 = scmp.eq.s32.totalorder %s29, 1
      %p115 = por %p113, %p114
      %p117 = scmp.ne.s32.totalorder %s102, %s116
      %p118 = scmp.eq.s32.totalorder %s29, 0
      %p119 = por %p117, %p118
      %s121 = sadd.s32 %s120, 1
      %p124 = scmp.eq.s32.totalorder %s23, 1
      %p125 = scmp.ne.s32.totalorder %s120, %s122
      %p126 = scmp.eq.s32.totalorder %s23, 0
      %p127 = por %p125, %p126
      %p128 = scmp.ne.s32.totalorder %s120, %s122
      %p129 = scmp.eq.s32.totalorder %s28, 1
      %p130 = por %p128, %p129
      %p131 = scmp.ne.s32.totalorder %s122, %s123
      %p132 = scmp.eq.s32.totalorder %s28, 0
      %p133 = por %p131, %p132
      %p134 = scmp.ne.s32.totalorder %s122, %s123
      %p135 = scmp.eq.s32.totalorder %s29, 1
      %p136 = por %p134, %p135
      %p138 = scmp.ne.s32.totalorder %s123, %s137
      %p139 = scmp.eq.s32.totalorder %s29, 0
      %p140 = por %p138, %p139
      %s142 = sadd.s32 %s141, 1
      %p145 = scmp.eq.s32.totalorder %s23, 1
      %p146 = scmp.ne.s32.totalorder %s141, %s143
      %p147 = scmp.eq.s32.totalorder %s23, 0
      %p148 = por %p146, %p147
      %p149 = scmp.ne.s32.totalorder %s141, %s143
      %p150 = scmp.eq.s32.totalorder %s28, 1
      %p151 = por %p149, %p150
      %p152 = scmp.ne.s32.totalorder %s143, %s144
      %p153 = scmp.eq.s32.totalorder %s28, 0
      %p154 = por %p152, %p153
      %p155 = scmp.ne.s32.totalorder %s143, %s144
      %p156 = scmp.eq.s32.totalorder %s29, 1
      %p157 = por %p155, %p156
      %p159 = scmp.ne.s32.totalorder %s144, %s158
      %p160 = scmp.eq.s32.totalorder %s29, 0
      %p161 = por %p159, %p160
      %s163 = sadd.s32 %s162, 1
      %p166 = scmp.eq.s32.totalorder %s23, 1
      %p167 = scmp.ne.s32.totalorder %s162, %s164
      %p168 = scmp.eq.s32.totalorder %s23, 0
      %p169 = por %p167, %p168
      %p170 = scmp.ne.s32.totalorder %s162, %s164
      %p171 = scmp.eq.s32.totalorder %s28, 1
      %p172 = por %p170, %p171
      %p173 = scmp.ne.s32.totalorder %s164, %s165
      %p174 = scmp.eq.s32.totalorder %s28, 0
      %p175 = por %p173, %p174
      %p176 = scmp.ne.s32.totalorder %s164, %s165
      %p177 = scmp.eq.s32.totalorder %s29, 1
      %p178 = por %p176, %p177
      %p180 = scmp.ne.s32.totalorder %s165, %s179
      %p181 = scmp.eq.s32.totalorder %s29, 0
      %p182 = por %p180, %p181
      %s184 = sadd.s32 %s183, 1
      %p187 = scmp.eq.s32.totalorder %s23, 1
      %p188 = scmp.ne.s32.totalorder %s183, %s185
      %p189 = scmp.eq.s32.totalorder %s23, 0
      %p190 = por %p188, %p189
      %p191 = scmp.ne.s32.totalorder %s183, %s185
      %p192 = scmp.eq.s32.totalorder %s28, 1
      %p193 = por %p191, %p192
      %p194 = scmp.ne.s32.totalorder %s185, %s186
      %p195 = scmp.eq.s32.totalorder %s28, 0
      %p196 = por %p194, %p195
      %p197 = scmp.ne.s32.totalorder %s185, %s186
      %p198 = scmp.eq.s32.totalorder %s29, 1
      %p199 = por %p197, %p198
      %p201 = scmp.ne.s32.totalorder %s186, %s200
      %p202 = scmp.eq.s32.totalorder %s29, 0
      %p203 = por %p201, %p202
      %s205 = sadd.s32 %s204, 1
      %p208 = scmp.eq.s32.totalorder %s23, 1
      %p209 = scmp.ne.s32.totalorder %s204, %s206
      %p210 = scmp.eq.s32.totalorder %s23, 0
      %p211 = por %p209, %p210
      %p212 = scmp.ne.s32.totalorder %s204, %s206
      %p213 = scmp.eq.s32.totalorder %s28, 1
      %p214 = por %p212, %p213
      %p215 = scmp.ne.s32.totalorder %s206, %s207
      %p216 = scmp.eq.s32.totalorder %s28, 0
      %p217 = por %p215, %p216
      %p218 = scmp.ne.s32.totalorder %s206, %s207
      %p219 = scmp.eq.s32.totalorder %s29, 1
      %p220 = por %p218, %p219
      %p222 = scmp.ne.s32.totalorder %s207, %s221
      %p223 = scmp.eq.s32.totalorder %s29, 0
      %p224 = por %p222, %p223
      %s226 = sadd.s32 %s225, 1
      %p229 = scmp.eq.s32.totalorder %s23, 1
      %p230 = scmp.ne.s32.totalorder %s225, %s227
      %p231 = scmp.eq.s32.totalorder %s23, 0
      %p232 = por %p230, %p231
      %p233 = scmp.ne.s32.totalorder %s225, %s227
      %p234 = scmp.eq.s32.totalorder %s28, 1
      %p235 = por %p233, %p234
      %p236 = scmp.ne.s32.totalorder %s227, %s228
      %p237 = scmp.eq.s32.totalorder %s28, 0
      %p238 = por %p236, %p237
      %p239 = scmp.ne.s32.totalorder %s227, %s228
      %p240 = scmp.eq.s32.totalorder %s29, 1
      %p241 = por %p239, %p240
      %p243 = scmp.ne.s32.totalorder %s228, %s242
      %p244 = scmp.eq.s32.totalorder %s29, 0
      %p245 = por %p243, %p244
      %s247 = sadd.s32 %s246, 1
      %p250 = scmp.eq.s32.totalorder %s23, 1
      %p251 = scmp.ne.s32.totalorder %s246, %s248
      %p252 = scmp.eq.s32.totalorder %s23, 0
      %p253 = por %p251, %p252
      %p254 = scmp.ne.s32.totalorder %s246, %s248
      %p255 = scmp.eq.s32.totalorder %s28, 1
      %p256 = por %p254, %p255
      %p257 = scmp.ne.s32.totalorder %s248, %s249
      %p258 = scmp.eq.s32.totalorder %s28, 0
      %p259 = por %p257, %p258
      %p260 = scmp.ne.s32.totalorder %s248, %s249
      %p261 = scmp.eq.s32.totalorder %s29, 1
      %p262 = por %p260, %p261
      %p264 = scmp.ne.s32.totalorder %s249, %s263
      %p265 = scmp.eq.s32.totalorder %s29, 0
      %p266 = por %p264, %p265
      %s268 = sadd.s32 %s267, 1
      %p271 = scmp.eq.s32.totalorder %s23, 1
      %p272 = scmp.ne.s32.totalorder %s267, %s269
      %p273 = scmp.eq.s32.totalorder %s23, 0
      %p274 = por %p272, %p273
      %p275 = scmp.ne.s32.totalorder %s267, %s269
      %p276 = scmp.eq.s32.totalorder %s28, 1
      %p277 = por %p275, %p276
      %p278 = scmp.ne.s32.totalorder %s269, %s270
      %p279 = scmp.eq.s32.totalorder %s28, 0
      %p280 = por %p278, %p279
      %p281 = scmp.ne.s32.totalorder %s269, %s270
      %p282 = scmp.eq.s32.totalorder %s29, 1
      %p283 = por %p281, %p282
      %p285 = scmp.ne.s32.totalorder %s270, %s284
      %p286 = scmp.eq.s32.totalorder %s29, 0
      %p287 = por %p285, %p286
      %s289 = sadd.s32 %s288, 1
      %p292 = scmp.eq.s32.totalorder %s23, 1
      %p293 = scmp.ne.s32.totalorder %s288, %s290
      %p294 = scmp.eq.s32.totalorder %s23, 0
      %p295 = por %p293, %p294
      %p296 = scmp.ne.s32.totalorder %s288, %s290
      %p297 = scmp.eq.s32.totalorder %s28, 1
      %p298 = por %p296, %p297
      %p299 = scmp.ne.s32.totalorder %s290, %s291
      %p300 = scmp.eq.s32.totalorder %s28, 0
      %p301 = por %p299, %p300
      %p302 = scmp.ne.s32.totalorder %s290, %s291
      %p303 = scmp.eq.s32.totalorder %s29, 1
      %p304 = por %p302, %p303
      %p306 = scmp.ne.s32.totalorder %s291, %s305
      %p307 = scmp.eq.s32.totalorder %s29, 0
      %p308 = por %p306, %p307
      %s309 = ssub.s32 %s23, %s30
      %p310 = scmp.eq.s32.totalorder %s309, 0
      %s312 = sadd.s32 %s311, 1
      %s313 = scalar_select %p310, %s311, %s312
      %p316 = pneg %p310
      %p317 = scmp.eq.s32.totalorder %s23, 1
      %p318 = por %p316, %p317
      %p319 = scmp.ne.s32.totalorder %s311, %s314
      %p320 = scmp.eq.s32.totalorder %s23, 0
      %p321 = por %p319, %p320
      %p322 = scmp.ne.s32.totalorder %s311, %s314
      %p323 = scmp.eq.s32.totalorder %s28, 1
      %p324 = por %p322, %p323
      %p325 = scmp.ne.s32.totalorder %s314, %s315
      %p326 = scmp.eq.s32.totalorder %s28, 0
      %p327 = por %p325, %p326
      %p328 = scmp.ne.s32.totalorder %s314, %s315
      %p329 = scmp.eq.s32.totalorder %s29, 1
      %p330 = por %p328, %p329
      %p332 = scmp.ne.s32.totalorder %s315, %s331
      %p333 = scmp.eq.s32.totalorder %s29, 0
      %p334 = por %p332, %p333
      %p335 = scmp.le.s32.totalorder 1, %s23
      %p336 = scmp.lt.s32.totalorder %s23, 3
      %p337 = pnand %p335, %p336
      %p338 = pneg %p337
      // Predicated region
      $region9: #{residual_net_forward_pallas.1} parent=5 // pred_check
        _
      $region10: #{residual_net_forward_pallas.1} parent=5 // pred_check_branch
        %340 = sbr.rel (%p337) target = $region12
      $region11: #{residual_net_forward_pallas.1} parent=5 // pred_region
        %s341 = ssub.s32 %s23, 1
        // Predicated region
        $region13: #{residual_net_forward_pallas.1} parent=11 // pred_check
          %p342 = pneg %p70
        $region14: #{residual_net_forward_pallas.1} parent=11 // pred_check_branch
          %344 = sbr.rel (%p342) target = $region16
        $region15: #{residual_net_forward_pallas.1} parent=11 // pred_region
          _
        $region16: #{residual_net_forward_pallas.1} parent=11 // pred_fallthru
          _
        // Predicated region
        $region17: #{residual_net_forward_pallas.1} parent=11 // pred_check
          %p345 = pneg %p91
        $region18: #{residual_net_forward_pallas.1} parent=11 // pred_check_branch
          %347 = sbr.rel (%p345) target = $region20
        $region19: #{residual_net_forward_pallas.1} parent=11 // pred_region
          _
        $region20: #{residual_net_forward_pallas.1} parent=11 // pred_fallthru
          _
        // Predicated region
        $region21: #{residual_net_forward_pallas.1} parent=11 // pred_check
          %p348 = pneg %p112
        $region22: #{residual_net_forward_pallas.1} parent=11 // pred_check_branch
          %350 = sbr.rel (%p348) target = $region24
        $region23: #{residual_net_forward_pallas.1} parent=11 // pred_region
          _
        $region24: #{residual_net_forward_pallas.1} parent=11 // pred_fallthru
          _
        // Predicated region
        $region25: #{residual_net_forward_pallas.1} parent=11 // pred_check
          %p351 = pneg %p133
        $region26: #{residual_net_forward_pallas.1} parent=11 // pred_check_branch
          %353 = sbr.rel (%p351) target = $region28
        $region27: #{residual_net_forward_pallas.1} parent=11 // pred_region
          %s355 = ssub.s32 16, 16
          %356 = vsyncadd [#allocation3], %s355
          %s358 = sshll.u32 [#allocation2], 4
          %s359 = int_to_ptr.vmem [resolvable:$true] %s358
          %361 = dma.hbm_to_vmem [thread:$0]  %s4, 16, %s359, [#allocation3]
        $region28: #{residual_net_forward_pallas.1} parent=11 // pred_fallthru
          _
        // Predicated region
        $region29: #{residual_net_forward_pallas.1} parent=11 // pred_check
          %p362 = pneg %p154
        $region30: #{residual_net_forward_pallas.1} parent=11 // pred_check_branch
          %364 = sbr.rel (%p362) target = $region32
        $region31: #{residual_net_forward_pallas.1} parent=11 // pred_region
          _
        $region32: #{residual_net_forward_pallas.1} parent=11 // pred_fallthru
          _
        // Predicated region
        $region33: #{residual_net_forward_pallas.1} parent=11 // pred_check
          %p365 = pneg %p175
        $region34: #{residual_net_forward_pallas.1} parent=11 // pred_check_branch
          %367 = sbr.rel (%p365) target = $region36
        $region35: #{residual_net_forward_pallas.1} parent=11 // pred_region
          %s369 = ssub.s32 16, 16
          %370 = vsyncadd [#allocation5], %s369
          %s372 = sshll.u32 [#allocation4], 4
          %s373 = int_to_ptr.vmem [resolvable:$true] %s372
          %375 = dma.hbm_to_vmem [thread:$0]  %s6, 16, %s373, [#allocation5]
        $region36: #{residual_net_forward_pallas.1} parent=11 // pred_fallthru
          _
        // Predicated region
        $region37: #{residual_net_forward_pallas.1} parent=11 // pred_check
          %p376 = pneg %p196
        $region38: #{residual_net_forward_pallas.1} parent=11 // pred_check_branch
          %378 = sbr.rel (%p376) target = $region40
        $region39: #{residual_net_forward_pallas.1} parent=11 // pred_region
          %s380 = ssub.s32 1024, 1024
          %381 = vsyncadd [#allocation5], %s380
          %s382 = sshll.u32 [#allocation6], 4
          %s383 = int_to_ptr.vmem [resolvable:$true] %s382
          %388 = dma.hbm_to_vmem [thread:$0]  %s7, 1024, %s383, [#allocation5], 64, 64, 4
        $region40: #{residual_net_forward_pallas.1} parent=11 // pred_fallthru
          _
        // Predicated region
        $region41: #{residual_net_forward_pallas.1} parent=11 // pred_check
          %p389 = pneg %p217
        $region42: #{residual_net_forward_pallas.1} parent=11 // pred_check_branch
          %391 = sbr.rel (%p389) target = $region44
        $region43: #{residual_net_forward_pallas.1} parent=11 // pred_region
          %s393 = ssub.s32 16, 16
          %394 = vsyncadd [#allocation8], %s393
          %s396 = sshll.u32 [#allocation7], 4
          %s397 = int_to_ptr.vmem [resolvable:$true] %s396
          %399 = dma.hbm_to_vmem [thread:$0]  %s8, 16, %s397, [#allocation8]
        $region44: #{residual_net_forward_pallas.1} parent=11 // pred_fallthru
          _
        // Predicated region
        $region45: #{residual_net_forward_pallas.1} parent=11 // pred_check
          %p400 = pneg %p238
        $region46: #{residual_net_forward_pallas.1} parent=11 // pred_check_branch
          %402 = sbr.rel (%p400) target = $region48
        $region47: #{residual_net_forward_pallas.1} parent=11 // pred_region
          %s404 = ssub.s32 1024, 1024
          %405 = vsyncadd [#allocation8], %s404
          %s406 = sshll.u32 [#allocation9], 4
          %s407 = int_to_ptr.vmem [resolvable:$true] %s406
          %412 = dma.hbm_to_vmem [thread:$0]  %s9, 1024, %s407, [#allocation8], 64, 64, 4
        $region48: #{residual_net_forward_pallas.1} parent=11 // pred_fallthru
          _
        // Predicated region
        $region49: #{residual_net_forward_pallas.1} parent=11 // pred_check
          %p413 = pneg %p259
        $region50: #{residual_net_forward_pallas.1} parent=11 // pred_check_branch
          %415 = sbr.rel (%p413) target = $region52
        $region51: #{residual_net_forward_pallas.1} parent=11 // pred_region
          _
        $region52: #{residual_net_forward_pallas.1} parent=11 // pred_fallthru
          _
        // Predicated region
        $region53: #{residual_net_forward_pallas.1} parent=11 // pred_check
          %p416 = pneg %p280
        $region54: #{residual_net_forward_pallas.1} parent=11 // pred_check_branch
          %418 = sbr.rel (%p416) target = $region56
        $region55: #{residual_net_forward_pallas.1} parent=11 // pred_region
          %s420 = ssub.s32 1024, 1024
          %421 = vsyncadd [#allocation11], %s420
          %s422 = sshll.u32 [#allocation10], 4
          %s423 = int_to_ptr.vmem [resolvable:$true] %s422
          %428 = dma.hbm_to_vmem [thread:$0]  %s11, 1024, %s423, [#allocation11], 64, 64, 4
        $region56: #{residual_net_forward_pallas.1} parent=11 // pred_fallthru
          _
        // Predicated region
        $region57: #{residual_net_forward_pallas.1} parent=11 // pred_check
          %p429 = pneg %p301
        $region58: #{residual_net_forward_pallas.1} parent=11 // pred_check_branch
          %431 = sbr.rel (%p429) target = $region60
        $region59: #{residual_net_forward_pallas.1} parent=11 // pred_region
          _
        $region60: #{residual_net_forward_pallas.1} parent=11 // pred_fallthru
          _
      $region12: #{residual_net_forward_pallas.1} parent=5 // pred_fallthru
        _
      %p432 = scmp.lt.s32.totalorder %s23, 2
      // Predicated region
      $region61: #{residual_net_forward_pallas.1} parent=5 // pred_check
        %p433 = pneg %p432
      $region62: #{residual_net_forward_pallas.1} parent=5 // pred_check_branch
        %435 = sbr.rel (%p433) target = $region64
      $region63: #{residual_net_forward_pallas.1} parent=5 // pred_region
        // Predicated region
        $region65: #{residual_net_forward_pallas.1} parent=63 // pred_check
          %p436 = pneg %p43
        $region66: #{residual_net_forward_pallas.1} parent=63 // pred_check_branch
          %438 = sbr.rel (%p436) target = $region68
        $region67: #{residual_net_forward_pallas.1} parent=63 // pred_region
          %s439 = smul.u32 4, %s23
          %p440 = scmp.lt.s32.totalorder %s439, 7
          %s441 = scalar_select %p440, %s439, 7
          %s442 = smul.addr %s441, 4
          %s443 = scalar_lea.vmem %s0, %s442
          %s444 = smul.u32 4, %s23
        $region68: #{residual_net_forward_pallas.1} parent=63 // pred_fallthru
          _
      $region64: #{residual_net_forward_pallas.1} parent=5 // pred_fallthru
        _
      %p445 = scmp.le.s32.totalorder 1, %s23
      %p446 = scmp.lt.s32.totalorder %s23, 3
      %p447 = pnand %p445, %p446
      %p448 = pneg %p447
      // Predicated region
      $region69: #{residual_net_forward_pallas.1} parent=5 // pred_check
        _
      $region70: #{residual_net_forward_pallas.1} parent=5 // pred_check_branch
        %450 = sbr.rel (%p447) target = $region72
      $region71: #{residual_net_forward_pallas.1} parent=5 // pred_region
        %s451 = ssub.s32 %s23, 1
        // Predicated region
        $region73: #{residual_net_forward_pallas.1} parent=71 // pred_check
          %p452 = pneg %p133
        $region74: #{residual_net_forward_pallas.1} parent=71 // pred_check_branch
          %454 = sbr.rel (%p452) target = $region76
        $region75: #{residual_net_forward_pallas.1} parent=71 // pred_region
          %455 = dma.done [#allocation3], 16
        $region76: #{residual_net_forward_pallas.1} parent=71 // pred_fallthru
          _
        // Predicated region
        $region77: #{residual_net_forward_pallas.1} parent=71 // pred_check
          %p456 = pneg %p175
        $region78: #{residual_net_forward_pallas.1} parent=71 // pred_check_branch
          %458 = sbr.rel (%p456) target = $region80
        $region79: #{residual_net_forward_pallas.1} parent=71 // pred_region
          %459 = dma.done [#allocation5], 16
        $region80: #{residual_net_forward_pallas.1} parent=71 // pred_fallthru
          _
        // Predicated region
        $region81: #{residual_net_forward_pallas.1} parent=71 // pred_check
          %p460 = pneg %p196
        $region82: #{residual_net_forward_pallas.1} parent=71 // pred_check_branch
          %462 = sbr.rel (%p460) target = $region84
        $region83: #{residual_net_forward_pallas.1} parent=71 // pred_region
          %463 = dma.done [#allocation5], 1024
        $region84: #{residual_net_forward_pallas.1} parent=71 // pred_fallthru
          _
        // Predicated region
        $region85: #{residual_net_forward_pallas.1} parent=71 // pred_check
          %p464 = pneg %p217
        $region86: #{residual_net_forward_pallas.1} parent=71 // pred_check_branch
          %466 = sbr.rel (%p464) target = $region88
        $region87: #{residual_net_forward_pallas.1} parent=71 // pred_region
          %467 = dma.done [#allocation8], 16
        $region88: #{residual_net_forward_pallas.1} parent=71 // pred_fallthru
          _
        // Predicated region
        $region89: #{residual_net_forward_pallas.1} parent=71 // pred_check
          %p468 = pneg %p238
        $region90: #{residual_net_forward_pallas.1} parent=71 // pred_check_branch
          %470 = sbr.rel (%p468) target = $region92
        $region91: #{residual_net_forward_pallas.1} parent=71 // pred_region
          %471 = dma.done [#allocation8], 1024
        $region92: #{residual_net_forward_pallas.1} parent=71 // pred_fallthru
          _
        // Predicated region
        $region93: #{residual_net_forward_pallas.1} parent=71 // pred_check
          %p472 = pneg %p280
        $region94: #{residual_net_forward_pallas.1} parent=71 // pred_check_branch
          %474 = sbr.rel (%p472) target = $region96
        $region95: #{residual_net_forward_pallas.1} parent=71 // pred_region
          %475 = dma.done [#allocation11], 1024
        $region96: #{residual_net_forward_pallas.1} parent=71 // pred_fallthru
          _
        %s476 = smul.u32 4, %s28
        %p477 = scmp.lt.s32.totalorder %s476, 7
        %s478 = scalar_select %p477, %s476, 7
        %s479 = smul.addr %s478, 4
        %s480 = scalar_lea.vmem %s0, %s479
        %p481 = pneg %p49
        %p482 = pneg %p46
        %p483 = pneg %p70
        %p484 = pneg %p67
        %p485 = pneg %p91
        %p486 = pneg %p88
        %p487 = pneg %p112
        %p488 = pneg %p109
        %p489 = pneg %p133
        %p490 = pneg %p130
        %p491 = pneg %p154
        %p492 = pneg %p151
        %p493 = pneg %p175
        %p494 = pneg %p172
        %p495 = pneg %p196
        %p496 = pneg %p193
        %p497 = pneg %p217
        %p498 = pneg %p214
        %p499 = pneg %p238
        %p500 = pneg %p235
        %p501 = pneg %p259
        %p502 = pneg %p256
        %p503 = pneg %p280
        %p504 = pneg %p277
        %p505 = pneg %p301
        %p506 = pneg %p298
        %p507 = pneg %p327
        %p508 = pneg %p324
        %s509 = smul.u32 4, %s28
        %p510 = scmp.lt.s32.totalorder %s509, 7
        %s511 = scalar_select %p510, %s509, 7
        %s512 = smul.addr %s511, 8
        %s513 = scalar_lea.vmem %s13, %s512
        %s514 = smul.u32 4, %s28
        %p515 = scmp.lt.s32.totalorder %s514, 7
        %s516 = scalar_select %p515, %s514, 7
        %s517 = smul.addr %s516, 4
        %s518 = scalar_lea.vmem %s0, %s517
        %s519 = smul.u32 4, %s28
        %s520 = smul.u32 4, %s28
        %p521 = scmp.lt.s32.totalorder %s520, 7
        %s522 = scalar_select %p521, %s520, 7
        %s523 = smul.addr %s522, 8
        %s524 = scalar_lea.vmem %s13, %s523
        %s525 = smul.u32 4, %s28
        %v527 = vld [vmem:[%s518] sm:$0xf]
        %v528 = vld [vmem:[%s518 + $0x4] sm:$0xf]
        %v529 = vld [vmem:[%s518 + $0x8] sm:$0xf]
        %v530 = vld [vmem:[%s518 + $0xc] sm:$0xf]
        %v531 = vld [vmem:[%s1] sm:$0xf]
        %v532 = vld [vmem:[%s1 + $0x4] sm:$0xf]
        %v533 = vld [vmem:[%s1 + $0x8] sm:$0xf]
        %v534 = vld [vmem:[%s1 + $0xc] sm:$0xf]
        %v535 = vld [vmem:[%s1 + $0x10] sm:$0xf]
        %v536 = vld [vmem:[%s1 + $0x14] sm:$0xf]
        %v537 = vld [vmem:[%s1 + $0x18] sm:$0xf]
        %v538 = vld [vmem:[%s1 + $0x1c] sm:$0xf]
        %v539 = vld [vmem:[%s1 + $0x20] sm:$0xf]
        %v540 = vld [vmem:[%s1 + $0x24] sm:$0xf]
        %v541 = vld [vmem:[%s1 + $0x28] sm:$0xf]
        %v542 = vld [vmem:[%s1 + $0x2c] sm:$0xf]
        %v543 = vld [vmem:[%s1 + $0x30] sm:$0xf]
        %v544 = vld [vmem:[%s1 + $0x34] sm:$0xf]
        %v545 = vld [vmem:[%s1 + $0x38] sm:$0xf]
        %v546 = vld [vmem:[%s1 + $0x3c] sm:$0xf]
        %v547 = vld [vmem:[%s2] sm:$0x1]
        %v549 = vlaneseq
        %v550 = vshrl.u32 %v549, 7
        %v551 = vsub.s32 0, %v550
        %v552 = vrot.slane %v547, %v551
        %v558 = vunpack.c.l.b16 %v527
        %v559 = vunpack.c.l.b16 %v528
        %v560 = vunpack.c.l.b16 %v529
        %v561 = vunpack.c.l.b16 %v530
        %v562 = vpack.c.b16 %v559, %v558
        %v563 = vpack.c.b16 %v561, %v560
        %v582 = vunpack.c.l.b16 %v531
        %v583 = vunpack.c.l.b16 %v532
        %v584 = vunpack.c.l.b16 %v533
        %v585 = vunpack.c.l.b16 %v534
        %v586 = vunpack.c.l.b16 %v535
        %v587 = vunpack.c.l.b16 %v536
        %v588 = vunpack.c.l.b16 %v537
        %v589 = vunpack.c.l.b16 %v538
        %v590 = vunpack.c.l.b16 %v539
        %v591 = vunpack.c.l.b16 %v540
        %v592 = vunpack.c.l.b16 %v541
        %v593 = vunpack.c.l.b16 %v542
        %v594 = vunpack.c.l.b16 %v543
        %v595 = vunpack.c.l.b16 %v544
        %v596 = vunpack.c.l.b16 %v545
        %v597 = vunpack.c.l.b16 %v546
        %v598 = vpack.c.b16 %v583, %v582
        %v599 = vpack.c.b16 %v585, %v584
        %v600 = vpack.c.b16 %v587, %v586
        %v601 = vpack.c.b16 %v589, %v588
        %v602 = vpack.c.b16 %v591, %v590
        %v603 = vpack.c.b16 %v593, %v592
        %v604 = vpack.c.b16 %v595, %v594
        %v605 = vpack.c.b16 %v597, %v596
        %614 = vmatprep.subr.bf16.mxu0 0
        %615 = vmatpush1.bf16.msra.mxu0 %v598
        %616 = vmatprep.subr.bf16.mxu0 0
        %617 = vmatpush1.bf16.msra.mxu0 %v599
        %618 = vmatprep.subr.bf16.mxu0 0
        %619 = vmatpush1.bf16.msra.mxu0 %v600
        %620 = vmatprep.subr.bf16.mxu0 0
        %621 = vmatpush1.bf16.msra.mxu0 %v601
        %622 = vmatprep.subr.bf16.mxu0 0
        %623 = vmatpush1.bf16.msra.mxu0 %v602
        %624 = vmatprep.subr.bf16.mxu0 0
        %625 = vmatpush1.bf16.msra.mxu0 %v603
        %626 = vmatprep.subr.bf16.mxu0 0
        %627 = vmatpush1.bf16.msra.mxu0 %v604
        %628 = vmatprep.subr.bf16.mxu0 0
        %629 = vmatpush1.bf16.msra.mxu0 %v605
        %630 = vmatprep.subr.bf16.mxu0 0
        %631 = vmatpush1.bf16.msra.mxu0 0
        %632 = vmatprep.subr.bf16.mxu0 0
        %633 = vmatpush1.bf16.msra.mxu0 0
        %634 = vmatprep.subr.bf16.mxu0 0
        %635 = vmatpush1.bf16.msra.mxu0 0
        %636 = vmatprep.subr.bf16.mxu0 0
        %637 = vmatpush1.bf16.msra.mxu0 0
        %638 = vmatprep.subr.bf16.mxu0 0
        %639 = vmatpush1.bf16.msra.mxu0 0
        %640 = vmatprep.subr.bf16.mxu0 0
        %641 = vmatpush1.bf16.msra.mxu0 0
        %642 = vmatprep.subr.bf16.mxu0 0
        %643 = vmatpush1.bf16.msra.mxu0 0
        %644 = vmatprep.subr.bf16.mxu0 0
        %645 = vmatpush1.bf16.msra.mxu0 0
        %646 = vmatprep.mubr.bf16.mxu0 0
        %647 = vmatmul.mubr.bf16.gmra.mrb[0].mxu0 %v562
        %v648 = vpop.f32.mrb[0].mxu0
        %v649 = vadd.f32 %v552, %v648
        %v650 = vpop.f32.mrb[0].mxu0
        %v651 = vpop.f32.mrb[0].mxu0
        %v652 = vadd.f32 %v552, %v651
        %v653 = vpop.f32.mrb[0].mxu0
        %654 = vmatprep.mubr.bf16.mxu0 0
        %655 = vmatmul.mubr.bf16.gmra.mrb[0].mxu0 %v563
        %v656 = vpop.f32.mrb[0].mxu0
        %v657 = vadd.f32 %v552, %v656
        %v658 = vpop.f32.mrb[0].mxu0
        %v659 = vpop.f32.mrb[0].mxu0
        %v660 = vadd.f32 %v552, %v659
        %v661 = vpop.f32.mrb[0].mxu0
        %662 = vdwg.mxu0
        %v663 = vld [vmem:[%s3] sm:$0xf]
        %v664 = vld [vmem:[%s3 + $0x4] sm:$0xf]
        %v665 = vld [vmem:[%s3 + $0x8] sm:$0xf]
        %v666 = vld [vmem:[%s3 + $0xc] sm:$0xf]
        %v667 = vld [vmem:[%s3 + $0x10] sm:$0xf]
        %v668 = vld [vmem:[%s3 + $0x14] sm:$0xf]
        %v669 = vld [vmem:[%s3 + $0x18] sm:$0xf]
        %v670 = vld [vmem:[%s3 + $0x1c] sm:$0xf]
        %v671 = vld [vmem:[%s3 + $0x20] sm:$0xf]
        %v672 = vld [vmem:[%s3 + $0x24] sm:$0xf]
        %v673 = vld [vmem:[%s3 + $0x28] sm:$0xf]
        %v674 = vld [vmem:[%s3 + $0x2c] sm:$0xf]
        %v675 = vld [vmem:[%s3 + $0x30] sm:$0xf]
        %v676 = vld [vmem:[%s3 + $0x34] sm:$0xf]
        %v677 = vld [vmem:[%s3 + $0x38] sm:$0xf]
        %v678 = vld [vmem:[%s3 + $0x3c] sm:$0xf]
        %v679 = vld [vmem:[#allocation2] sm:$0x1]
        %v680 = vld [vmem:[%s5] sm:$0xf]
        %v681 = vld [vmem:[%s5 + $0x4] sm:$0xf]
        %v682 = vld [vmem:[%s5 + $0x8] sm:$0xf]
        %v683 = vld [vmem:[%s5 + $0xc] sm:$0xf]
        %v684 = vld [vmem:[%s5 + $0x10] sm:$0xf]
        %v685 = vld [vmem:[%s5 + $0x14] sm:$0xf]
        %v686 = vld [vmem:[%s5 + $0x18] sm:$0xf]
        %v687 = vld [vmem:[%s5 + $0x1c] sm:$0xf]
        %v688 = vld [vmem:[%s5 + $0x20] sm:$0xf]
        %v689 = vld [vmem:[%s5 + $0x24] sm:$0xf]
        %v690 = vld [vmem:[%s5 + $0x28] sm:$0xf]
        %v691 = vld [vmem:[%s5 + $0x2c] sm:$0xf]
        %v692 = vld [vmem:[%s5 + $0x30] sm:$0xf]
        %v693 = vld [vmem:[%s5 + $0x34] sm:$0xf]
        %v694 = vld [vmem:[%s5 + $0x38] sm:$0xf]
        %v695 = vld [vmem:[%s5 + $0x3c] sm:$0xf]
        %v696 = vld [vmem:[#allocation4] sm:$0x1]
        %v697 = vmax.f32 %v649, 0.0
        %v698 = vmax.f32 %v652, 0.0
        %v699 = vmax.f32 %v657, 0.0
        %v700 = vmax.f32 %v660, 0.0
        %v701 = vpack.c.bf16 %v698, %v697
        %v702 = vpack.c.bf16 %v700, %v699
        %v704 = vlaneseq
        %v705 = vshrl.u32 %v704, 7
        %v706 = vsub.s32 0, %v705
        %v707 = vrot.slane %v679, %v706
        %v725 = vunpack.c.l.b16 %v663
        %v726 = vunpack.c.l.b16 %v664
        %v727 = vunpack.c.l.b16 %v665
        %v728 = vunpack.c.l.b16 %v666
        %v729 = vunpack.c.l.b16 %v667
        %v730 = vunpack.c.l.b16 %v668
        %v731 = vunpack.c.l.b16 %v669
        %v732 = vunpack.c.l.b16 %v670
        %v733 = vunpack.c.l.b16 %v671
        %v734 = vunpack.c.l.b16 %v672
        %v735 = vunpack.c.l.b16 %v673
        %v736 = vunpack.c.l.b16 %v674
        %v737 = vunpack.c.l.b16 %v675
        %v738 = vunpack.c.l.b16 %v676
        %v739 = vunpack.c.l.b16 %v677
        %v740 = vunpack.c.l.b16 %v678
        %v741 = vpack.c.b16 %v726, %v725
        %v742 = vpack.c.b16 %v728, %v727
        %v743 = vpack.c.b16 %v730, %v729
        %v744 = vpack.c.b16 %v732, %v731
        %v745 = vpack.c.b16 %v734, %v733
        %v746 = vpack.c.b16 %v736, %v735
        %v747 = vpack.c.b16 %v738, %v737
        %v748 = vpack.c.b16 %v740, %v739
        %757 = vmatprep.subr.bf16.mxu0 0
        %758 = vmatpush1.bf16.msra.mxu0 %v741
        %759 = vmatprep.subr.bf16.mxu0 0
        %760 = vmatpush1.bf16.msra.mxu0 %v742
        %761 = vmatprep.subr.bf16.mxu0 0
        %762 = vmatpush1.bf16.msra.mxu0 %v743
        %763 = vmatprep.subr.bf16.mxu0 0
        %764 = vmatpush1.bf16.msra.mxu0 %v744
        %765 = vmatprep.subr.bf16.mxu0 0
        %766 = vmatpush1.bf16.msra.mxu0 %v745
        %767 = vmatprep.subr.bf16.mxu0 0
        %768 = vmatpush1.bf16.msra.mxu0 %v746
        %769 = vmatprep.subr.bf16.mxu0 0
        %770 = vmatpush1.bf16.msra.mxu0 %v747
        %771 = vmatprep.subr.bf16.mxu0 0
        %772 = vmatpush1.bf16.msra.mxu0 %v748
        %773 = vmatprep.subr.bf16.mxu0 0
        %774 = vmatpush1.bf16.msra.mxu0 0
        %775 = vmatprep.subr.bf16.mxu0 0
        %776 = vmatpush1.bf16.msra.mxu0 0
        %777 = vmatprep.subr.bf16.mxu0 0
        %778 = vmatpush1.bf16.msra.mxu0 0
        %779 = vmatprep.subr.bf16.mxu0 0
        %780 = vmatpush1.bf16.msra.mxu0 0
        %781 = vmatprep.subr.bf16.mxu0 0
        %782 = vmatpush1.bf16.msra.mxu0 0
        %783 = vmatprep.subr.bf16.mxu0 0
        %784 = vmatpush1.bf16.msra.mxu0 0
        %785 = vmatprep.subr.bf16.mxu0 0
        %786 = vmatpush1.bf16.msra.mxu0 0
        %787 = vmatprep.subr.bf16.mxu0 0
        %788 = vmatpush1.bf16.msra.mxu0 0
        %789 = vmatprep.mubr.bf16.mxu0 0
        %790 = vmatmul.mubr.bf16.gmra.mrb[0].mxu0 %v701
        %v791 = vpop.f32.mrb[0].mxu0
        %v792 = vadd.f32 %v707, %v791
        %v793 = vpop.f32.mrb[0].mxu0
        %v794 = vpop.f32.mrb[0].mxu0
        %v795 = vadd.f32 %v707, %v794
        %v796 = vpop.f32.mrb[0].mxu0
        %797 = vmatprep.mubr.bf16.mxu0 0
        %798 = vmatmul.mubr.bf16.gmra.mrb[0].mxu0 %v702
        %v799 = vpop.f32.mrb[0].mxu0
        %v800 = vadd.f32 %v707, %v799
        %v801 = vpop.f32.mrb[0].mxu0
        %v802 = vpop.f32.mrb[0].mxu0
        %v803 = vadd.f32 %v707, %v802
        %v804 = vpop.f32.mrb[0].mxu0
        %805 = vdwg.mxu0
        %v806 = vmax.f32 %v792, 0.0
        %v807 = vmax.f32 %v795, 0.0
        %v808 = vmax.f32 %v800, 0.0
        %v809 = vmax.f32 %v803, 0.0
        %v810 = vpack.c.bf16 %v807, %v806
        %v811 = vpack.c.bf16 %v809, %v808
        %v813 = vlaneseq
        %v814 = vshrl.u32 %v813, 7
        %v815 = vsub.s32 0, %v814
        %v816 = vrot.slane %v696, %v815
        %v834 = vunpack.c.l.b16 %v680
        %v835 = vunpack.c.l.b16 %v681
        %v836 = vunpack.c.l.b16 %v682
        %v837 = vunpack.c.l.b16 %v683
        %v838 = vunpack.c.l.b16 %v684
        %v839 = vunpack.c.l.b16 %v685
        %v840 = vunpack.c.l.b16 %v686
        %v841 = vunpack.c.l.b16 %v687
        %v842 = vunpack.c.l.b16 %v688
        %v843 = vunpack.c.l.b16 %v689
        %v844 = vunpack.c.l.b16 %v690
        %v845 = vunpack.c.l.b16 %v691
        %v846 = vunpack.c.l.b16 %v692
        %v847 = vunpack.c.l.b16 %v693
        %v848 = vunpack.c.l.b16 %v694
        %v849 = vunpack.c.l.b16 %v695
        %v850 = vpack.c.b16 %v835, %v834
        %v851 = vpack.c.b16 %v837, %v836
        %v852 = vpack.c.b16 %v839, %v838
        %v853 = vpack.c.b16 %v841, %v840
        %v854 = vpack.c.b16 %v843, %v842
        %v855 = vpack.c.b16 %v845, %v844
        %v856 = vpack.c.b16 %v847, %v846
        %v857 = vpack.c.b16 %v849, %v848
        %866 = vmatprep.subr.bf16.mxu0 0
        %867 = vmatpush1.bf16.msra.mxu0 %v850
        %868 = vmatprep.subr.bf16.mxu0 0
        %869 = vmatpush1.bf16.msra.mxu0 %v851
        %870 = vmatprep.subr.bf16.mxu0 0
        %871 = vmatpush1.bf16.msra.mxu0 %v852
        %872 = vmatprep.subr.bf16.mxu0 0
        %873 = vmatpush1.bf16.msra.mxu0 %v853
        %874 = vmatprep.subr.bf16.mxu0 0
        %875 = vmatpush1.bf16.msra.mxu0 %v854
        %876 = vmatprep.subr.bf16.mxu0 0
        %877 = vmatpush1.bf16.msra.mxu0 %v855
        %878 = vmatprep.subr.bf16.mxu0 0
        %879 = vmatpush1.bf16.msra.mxu0 %v856
        %880 = vmatprep.subr.bf16.mxu0 0
        %881 = vmatpush1.bf16.msra.mxu0 %v857
        %882 = vmatprep.subr.bf16.mxu0 0
        %883 = vmatpush1.bf16.msra.mxu0 0
        %884 = vmatprep.subr.bf16.mxu0 0
        %885 = vmatpush1.bf16.msra.mxu0 0
        %886 = vmatprep.subr.bf16.mxu0 0
        %887 = vmatpush1.bf16.msra.mxu0 0
        %888 = vmatprep.subr.bf16.mxu0 0
        %889 = vmatpush1.bf16.msra.mxu0 0
        %890 = vmatprep.subr.bf16.mxu0 0
        %891 = vmatpush1.bf16.msra.mxu0 0
        %892 = vmatprep.subr.bf16.mxu0 0
        %893 = vmatpush1.bf16.msra.mxu0 0
        %894 = vmatprep.subr.bf16.mxu0 0
        %895 = vmatpush1.bf16.msra.mxu0 0
        %896 = vmatprep.subr.bf16.mxu0 0
        %897 = vmatpush1.bf16.msra.mxu0 0
        %898 = vmatprep.mubr.bf16.mxu0 0
        %899 = vmatmul.mubr.bf16.gmra.mrb[0].mxu0 %v810
        %v900 = vpop.f32.mrb[0].mxu0
        %v901 = vadd.f32 %v816, %v900
        %v902 = vpop.f32.mrb[0].mxu0
        %v903 = vpop.f32.mrb[0].mxu0
        %v904 = vadd.f32 %v816, %v903
        %v905 = vpop.f32.mrb[0].mxu0
        %906 = vmatprep.mubr.bf16.mxu0 0
        %907 = vmatmul.mubr.bf16.gmra.mrb[0].mxu0 %v811
        %v908 = vpop.f32.mrb[0].mxu0
        %v909 = vadd.f32 %v816, %v908
        %v910 = vpop.f32.mrb[0].mxu0
        %v911 = vpop.f32.mrb[0].mxu0
        %v912 = vadd.f32 %v816, %v911
        %v913 = vpop.f32.mrb[0].mxu0
        %914 = vdwg.mxu0
        %v915 = vadd.f32 %v649, %v901
        %v916 = vadd.f32 %v652, %v904
        %v917 = vadd.f32 %v657, %v909
        %v918 = vadd.f32 %v660, %v912
        %v919 = vld [vmem:[#allocation6] sm:$0xf]
        %v920 = vld [vmem:[#allocation6 + $0x4] sm:$0xf]
        %v921 = vld [vmem:[#allocation6 + $0x8] sm:$0xf]
        %v922 = vld [vmem:[#allocation6 + $0xc] sm:$0xf]
        %v923 = vld [vmem:[#allocation6 + $0x10] sm:$0xf]
        %v924 = vld [vmem:[#allocation6 + $0x14] sm:$0xf]
        %v925 = vld [vmem:[#allocation6 + $0x18] sm:$0xf]
        %v926 = vld [vmem:[#allocation6 + $0x1c] sm:$0xf]
        %v927 = vld [vmem:[#allocation6 + $0x20] sm:$0xf]
        %v928 = vld [vmem:[#allocation6 + $0x24] sm:$0xf]
        %v929 = vld [vmem:[#allocation6 + $0x28] sm:$0xf]
        %v930 = vld [vmem:[#allocation6 + $0x2c] sm:$0xf]
        %v931 = vld [vmem:[#allocation6 + $0x30] sm:$0xf]
        %v932 = vld [vmem:[#allocation6 + $0x34] sm:$0xf]
        %v933 = vld [vmem:[#allocation6 + $0x38] sm:$0xf]
        %v934 = vld [vmem:[#allocation6 + $0x3c] sm:$0xf]
        %v935 = vld [vmem:[#allocation7] sm:$0x1]
        %v936 = vld [vmem:[#allocation9] sm:$0xf]
        %v937 = vld [vmem:[#allocation9 + $0x4] sm:$0xf]
        %v938 = vld [vmem:[#allocation9 + $0x8] sm:$0xf]
        %v939 = vld [vmem:[#allocation9 + $0xc] sm:$0xf]
        %v940 = vld [vmem:[#allocation9 + $0x10] sm:$0xf]
        %v941 = vld [vmem:[#allocation9 + $0x14] sm:$0xf]
        %v942 = vld [vmem:[#allocation9 + $0x18] sm:$0xf]
        %v943 = vld [vmem:[#allocation9 + $0x1c] sm:$0xf]
        %v944 = vld [vmem:[#allocation9 + $0x20] sm:$0xf]
        %v945 = vld [vmem:[#allocation9 + $0x24] sm:$0xf]
        %v946 = vld [vmem:[#allocation9 + $0x28] sm:$0xf]
        %v947 = vld [vmem:[#allocation9 + $0x2c] sm:$0xf]
        %v948 = vld [vmem:[#allocation9 + $0x30] sm:$0xf]
        %v949 = vld [vmem:[#allocation9 + $0x34] sm:$0xf]
        %v950 = vld [vmem:[#allocation9 + $0x38] sm:$0xf]
        %v951 = vld [vmem:[#allocation9 + $0x3c] sm:$0xf]
        %v952 = vld [vmem:[%s10] sm:$0x1]
        %v953 = vmax.f32 %v915, 0.0
        %v954 = vmax.f32 %v916, 0.0
        %v955 = vmax.f32 %v917, 0.0
        %v956 = vmax.f32 %v918, 0.0
        %v957 = vpack.c.bf16 %v954, %v953
        %v958 = vpack.c.bf16 %v956, %v955
        %v960 = vlaneseq
        %v961 = vshrl.u32 %v960, 7
        %v962 = vsub.s32 0, %v961
        %v963 = vrot.slane %v935, %v962
        %v981 = vunpack.c.l.b16 %v919
        %v982 = vunpack.c.l.b16 %v920
        %v983 = vunpack.c.l.b16 %v921
        %v984 = vunpack.c.l.b16 %v922
        %v985 = vunpack.c.l.b16 %v923
        %v986 = vunpack.c.l.b16 %v924
        %v987 = vunpack.c.l.b16 %v925
        %v988 = vunpack.c.l.b16 %v926
        %v989 = vunpack.c.l.b16 %v927
        %v990 = vunpack.c.l.b16 %v928
        %v991 = vunpack.c.l.b16 %v929
        %v992 = vunpack.c.l.b16 %v930
        %v993 = vunpack.c.l.b16 %v931
        %v994 = vunpack.c.l.b16 %v932
        %v995 = vunpack.c.l.b16 %v933
        %v996 = vunpack.c.l.b16 %v934
        %v997 = vpack.c.b16 %v982, %v981
        %v998 = vpack.c.b16 %v984, %v983
        %v999 = vpack.c.b16 %v986, %v985
        %v1000 = vpack.c.b16 %v988, %v987
        %v1001 = vpack.c.b16 %v990, %v989
        %v1002 = vpack.c.b16 %v992, %v991
        %v1003 = vpack.c.b16 %v994, %v993
        %v1004 = vpack.c.b16 %v996, %v995
        %1013 = vmatprep.subr.bf16.mxu0 0
        %1014 = vmatpush1.bf16.msra.mxu0 %v997
        %1015 = vmatprep.subr.bf16.mxu0 0
        %1016 = vmatpush1.bf16.msra.mxu0 %v998
        %1017 = vmatprep.subr.bf16.mxu0 0
        %1018 = vmatpush1.bf16.msra.mxu0 %v999
        %1019 = vmatprep.subr.bf16.mxu0 0
        %1020 = vmatpush1.bf16.msra.mxu0 %v1000
        %1021 = vmatprep.subr.bf16.mxu0 0
        %1022 = vmatpush1.bf16.msra.mxu0 %v1001
        %1023 = vmatprep.subr.bf16.mxu0 0
        %1024 = vmatpush1.bf16.msra.mxu0 %v1002
        %1025 = vmatprep.subr.bf16.mxu0 0
        %1026 = vmatpush1.bf16.msra.mxu0 %v1003
        %1027 = vmatprep.subr.bf16.mxu0 0
        %1028 = vmatpush1.bf16.msra.mxu0 %v1004
        %1029 = vmatprep.subr.bf16.mxu0 0
        %1030 = vmatpush1.bf16.msra.mxu0 0
        %1031 = vmatprep.subr.bf16.mxu0 0
        %1032 = vmatpush1.bf16.msra.mxu0 0
        %1033 = vmatprep.subr.bf16.mxu0 0
        %1034 = vmatpush1.bf16.msra.mxu0 0
        %1035 = vmatprep.subr.bf16.mxu0 0
        %1036 = vmatpush1.bf16.msra.mxu0 0
        %1037 = vmatprep.subr.bf16.mxu0 0
        %1038 = vmatpush1.bf16.msra.mxu0 0
        %1039 = vmatprep.subr.bf16.mxu0 0
        %1040 = vmatpush1.bf16.msra.mxu0 0
        %1041 = vmatprep.subr.bf16.mxu0 0
        %1042 = vmatpush1.bf16.msra.mxu0 0
        %1043 = vmatprep.subr.bf16.mxu0 0
        %1044 = vmatpush1.bf16.msra.mxu0 0
        %1045 = vmatprep.mubr.bf16.mxu0 0
        %1046 = vmatmul.mubr.bf16.gmra.mrb[0].mxu0 %v957
        %v1047 = vpop.f32.mrb[0].mxu0
        %v1048 = vadd.f32 %v963, %v1047
        %v1049 = vpop.f32.mrb[0].mxu0
        %v1050 = vpop.f32.mrb[0].mxu0
        %v1051 = vadd.f32 %v963, %v1050
        %v1052 = vpop.f32.mrb[0].mxu0
        %1053 = vmatprep.mubr.bf16.mxu0 0
        %1054 = vmatmul.mubr.bf16.gmra.mrb[0].mxu0 %v958
        %v1055 = vpop.f32.mrb[0].mxu0
        %v1056 = vadd.f32 %v963, %v1055
        %v1057 = vpop.f32.mrb[0].mxu0
        %v1058 = vpop.f32.mrb[0].mxu0
        %v1059 = vadd.f32 %v963, %v1058
        %v1060 = vpop.f32.mrb[0].mxu0
        %1061 = vdwg.mxu0
        %v1062 = vmax.f32 %v1048, 0.0
        %v1063 = vmax.f32 %v1051, 0.0
        %v1064 = vmax.f32 %v1056, 0.0
        %v1065 = vmax.f32 %v1059, 0.0
        %v1066 = vpack.c.bf16 %v1063, %v1062
        %v1067 = vpack.c.bf16 %v1065, %v1064
        %v1069 = vlaneseq
        %v1070 = vshrl.u32 %v1069, 7
        %v1071 = vsub.s32 0, %v1070
        %v1072 = vrot.slane %v952, %v1071
        %v1090 = vunpack.c.l.b16 %v936
        %v1091 = vunpack.c.l.b16 %v937
        %v1092 = vunpack.c.l.b16 %v938
        %v1093 = vunpack.c.l.b16 %v939
        %v1094 = vunpack.c.l.b16 %v940
        %v1095 = vunpack.c.l.b16 %v941
        %v1096 = vunpack.c.l.b16 %v942
        %v1097 = vunpack.c.l.b16 %v943
        %v1098 = vunpack.c.l.b16 %v944
        %v1099 = vunpack.c.l.b16 %v945
        %v1100 = vunpack.c.l.b16 %v946
        %v1101 = vunpack.c.l.b16 %v947
        %v1102 = vunpack.c.l.b16 %v948
        %v1103 = vunpack.c.l.b16 %v949
        %v1104 = vunpack.c.l.b16 %v950
        %v1105 = vunpack.c.l.b16 %v951
        %v1106 = vpack.c.b16 %v1091, %v1090
        %v1107 = vpack.c.b16 %v1093, %v1092
        %v1108 = vpack.c.b16 %v1095, %v1094
        %v1109 = vpack.c.b16 %v1097, %v1096
        %v1110 = vpack.c.b16 %v1099, %v1098
        %v1111 = vpack.c.b16 %v1101, %v1100
        %v1112 = vpack.c.b16 %v1103, %v1102
        %v1113 = vpack.c.b16 %v1105, %v1104
        %1122 = vmatprep.subr.bf16.mxu0 0
        %1123 = vmatpush1.bf16.msra.mxu0 %v1106
        %1124 = vmatprep.subr.bf16.mxu0 0
        %1125 = vmatpush1.bf16.msra.mxu0 %v1107
        %1126 = vmatprep.subr.bf16.mxu0 0
        %1127 = vmatpush1.bf16.msra.mxu0 %v1108
        %1128 = vmatprep.subr.bf16.mxu0 0
        %1129 = vmatpush1.bf16.msra.mxu0 %v1109
        %1130 = vmatprep.subr.bf16.mxu0 0
        %1131 = vmatpush1.bf16.msra.mxu0 %v1110
        %1132 = vmatprep.subr.bf16.mxu0 0
        %1133 = vmatpush1.bf16.msra.mxu0 %v1111
        %1134 = vmatprep.subr.bf16.mxu0 0
        %1135 = vmatpush1.bf16.msra.mxu0 %v1112
        %1136 = vmatprep.subr.bf16.mxu0 0
        %1137 = vmatpush1.bf16.msra.mxu0 %v1113
        %1138 = vmatprep.subr.bf16.mxu0 0
        %1139 = vmatpush1.bf16.msra.mxu0 0
        %1140 = vmatprep.subr.bf16.mxu0 0
        %1141 = vmatpush1.bf16.msra.mxu0 0
        %1142 = vmatprep.subr.bf16.mxu0 0
        %1143 = vmatpush1.bf16.msra.mxu0 0
        %1144 = vmatprep.subr.bf16.mxu0 0
        %1145 = vmatpush1.bf16.msra.mxu0 0
        %1146 = vmatprep.subr.bf16.mxu0 0
        %1147 = vmatpush1.bf16.msra.mxu0 0
        %1148 = vmatprep.subr.bf16.mxu0 0
        %1149 = vmatpush1.bf16.msra.mxu0 0
        %1150 = vmatprep.subr.bf16.mxu0 0
        %1151 = vmatpush1.bf16.msra.mxu0 0
        %1152 = vmatprep.subr.bf16.mxu0 0
        %1153 = vmatpush1.bf16.msra.mxu0 0
        %1154 = vmatprep.mubr.bf16.mxu0 0
        %1155 = vmatmul.mubr.bf16.gmra.mrb[0].mxu0 %v1066
        %v1156 = vpop.f32.mrb[0].mxu0
        %v1157 = vadd.f32 %v1072, %v1156
        %v1158 = vpop.f32.mrb[0].mxu0
        %v1159 = vpop.f32.mrb[0].mxu0
        %v1160 = vadd.f32 %v1072, %v1159
        %v1161 = vpop.f32.mrb[0].mxu0
        %1162 = vmatprep.mubr.bf16.mxu0 0
        %1163 = vmatmul.mubr.bf16.gmra.mrb[0].mxu0 %v1067
        %v1164 = vpop.f32.mrb[0].mxu0
        %v1165 = vadd.f32 %v1072, %v1164
        %v1166 = vpop.f32.mrb[0].mxu0
        %v1167 = vpop.f32.mrb[0].mxu0
        %v1168 = vadd.f32 %v1072, %v1167
        %v1169 = vpop.f32.mrb[0].mxu0
        %1170 = vdwg.mxu0
        %v1171 = vadd.f32 %v915, %v1157
        %v1172 = vadd.f32 %v916, %v1160
        %v1173 = vadd.f32 %v917, %v1165
        %v1174 = vadd.f32 %v918, %v1168
        %v1175 = vpack.c.bf16 %v1172, %v1171
        %v1176 = vpack.c.bf16 %v1174, %v1173
        %v1177 = vld [vmem:[#allocation10] sm:$0xf]
        %v1178 = vld [vmem:[#allocation10 + $0x4] sm:$0xf]
        %v1179 = vld [vmem:[#allocation10 + $0x8] sm:$0xf]
        %v1180 = vld [vmem:[#allocation10 + $0xc] sm:$0xf]
        %v1181 = vld [vmem:[#allocation10 + $0x10] sm:$0xf]
        %v1182 = vld [vmem:[#allocation10 + $0x14] sm:$0xf]
        %v1183 = vld [vmem:[#allocation10 + $0x18] sm:$0xf]
        %v1184 = vld [vmem:[#allocation10 + $0x1c] sm:$0xf]
        %v1185 = vld [vmem:[#allocation10 + $0x20] sm:$0xf]
        %v1186 = vld [vmem:[#allocation10 + $0x24] sm:$0xf]
        %v1187 = vld [vmem:[#allocation10 + $0x28] sm:$0xf]
        %v1188 = vld [vmem:[#allocation10 + $0x2c] sm:$0xf]
        %v1189 = vld [vmem:[#allocation10 + $0x30] sm:$0xf]
        %v1190 = vld [vmem:[#allocation10 + $0x34] sm:$0xf]
        %v1191 = vld [vmem:[#allocation10 + $0x38] sm:$0xf]
        %v1192 = vld [vmem:[#allocation10 + $0x3c] sm:$0xf]
        %v1193 = vld [vmem:[%s12] sm:$0x1]
        %v1195 = vlaneseq
        %v1196 = vshrl.u32 %v1195, 7
        %v1197 = vsub.s32 0, %v1196
        %v1198 = vrot.slane %v1193, %v1197
        %v1216 = vunpack.c.l.b16 %v1177
        %v1217 = vunpack.c.l.b16 %v1178
        %v1218 = vunpack.c.l.b16 %v1179
        %v1219 = vunpack.c.l.b16 %v1180
        %v1220 = vunpack.c.l.b16 %v1181
        %v1221 = vunpack.c.l.b16 %v1182
        %v1222 = vunpack.c.l.b16 %v1183
        %v1223 = vunpack.c.l.b16 %v1184
        %v1224 = vunpack.c.l.b16 %v1185
        %v1225 = vunpack.c.l.b16 %v1186
        %v1226 = vunpack.c.l.b16 %v1187
        %v1227 = vunpack.c.l.b16 %v1188
        %v1228 = vunpack.c.l.b16 %v1189
        %v1229 = vunpack.c.l.b16 %v1190
        %v1230 = vunpack.c.l.b16 %v1191
        %v1231 = vunpack.c.l.b16 %v1192
        %v1232 = vpack.c.b16 %v1217, %v1216
        %v1233 = vpack.c.b16 %v1219, %v1218
        %v1234 = vpack.c.b16 %v1221, %v1220
        %v1235 = vpack.c.b16 %v1223, %v1222
        %v1236 = vpack.c.b16 %v1225, %v1224
        %v1237 = vpack.c.b16 %v1227, %v1226
        %v1238 = vpack.c.b16 %v1229, %v1228
        %v1239 = vpack.c.b16 %v1231, %v1230
        %1248 = vmatprep.subr.bf16.mxu0 0
        %1249 = vmatpush1.bf16.msra.mxu0 %v1232
        %1250 = vmatprep.subr.bf16.mxu0 0
        %1251 = vmatpush1.bf16.msra.mxu0 %v1233
        %1252 = vmatprep.subr.bf16.mxu0 0
        %1253 = vmatpush1.bf16.msra.mxu0 %v1234
        %1254 = vmatprep.subr.bf16.mxu0 0
        %1255 = vmatpush1.bf16.msra.mxu0 %v1235
        %1256 = vmatprep.subr.bf16.mxu0 0
        %1257 = vmatpush1.bf16.msra.mxu0 %v1236
        %1258 = vmatprep.subr.bf16.mxu0 0
        %1259 = vmatpush1.bf16.msra.mxu0 %v1237
        %1260 = vmatprep.subr.bf16.mxu0 0
        %1261 = vmatpush1.bf16.msra.mxu0 %v1238
        %1262 = vmatprep.subr.bf16.mxu0 0
        %1263 = vmatpush1.bf16.msra.mxu0 %v1239
        %1264 = vmatprep.subr.bf16.mxu0 0
        %1265 = vmatpush1.bf16.msra.mxu0 0
        %1266 = vmatprep.subr.bf16.mxu0 0
        %1267 = vmatpush1.bf16.msra.mxu0 0
        %1268 = vmatprep.subr.bf16.mxu0 0
        %1269 = vmatpush1.bf16.msra.mxu0 0
        %1270 = vmatprep.subr.bf16.mxu0 0
        %1271 = vmatpush1.bf16.msra.mxu0 0
        %1272 = vmatprep.subr.bf16.mxu0 0
        %1273 = vmatpush1.bf16.msra.mxu0 0
        %1274 = vmatprep.subr.bf16.mxu0 0
        %1275 = vmatpush1.bf16.msra.mxu0 0
        %1276 = vmatprep.subr.bf16.mxu0 0
        %1277 = vmatpush1.bf16.msra.mxu0 0
        %1278 = vmatprep.subr.bf16.mxu0 0
        %1279 = vmatpush1.bf16.msra.mxu0 0
        %1280 = vmatprep.mubr.bf16.mxu0 0
        %1281 = vmatmul.mubr.bf16.gmra.mrb[0].mxu0 %v1175
        %v1282 = vpop.f32.mrb[0].mxu0
        %v1283 = vadd.f32 %v1198, %v1282
        %v1284 = vpop.f32.mrb[0].mxu0
        %v1285 = vpop.f32.mrb[0].mxu0
        %v1286 = vadd.f32 %v1198, %v1285
        %v1287 = vpop.f32.mrb[0].mxu0
        %1288 = vmatprep.mubr.bf16.mxu0 0
        %1289 = vmatmul.mubr.bf16.gmra.mrb[0].mxu0 %v1176
        %v1290 = vpop.f32.mrb[0].mxu0
        %v1291 = vadd.f32 %v1198, %v1290
        %v1292 = vpop.f32.mrb[0].mxu0
        %v1293 = vpop.f32.mrb[0].mxu0
        %v1294 = vadd.f32 %v1198, %v1293
        %v1295 = vpop.f32.mrb[0].mxu0
        %1296 = vdwg.mxu0
        %1297 = vst [vmem:[%s524] sm:$0xff] %v1283
        %1298 = vst [vmem:[%s524 + $0x8] sm:$0xff] %v1286
        %1299 = vst [vmem:[%s524 + $0x10] sm:$0xff] %v1291
        %1300 = vst [vmem:[%s524 + $0x18] sm:$0xff] %v1294
        %s1301 = smul.u32 4, %s28
        %p1302 = scmp.lt.s32.totalorder %s1301, 7
        %s1303 = scalar_select %p1302, %s1301, 7
        %s1304 = smul.addr %s1303, 8
        %s1305 = scalar_lea.vmem %s13, %s1304
        // Predicated region
        $region97: #{residual_net_forward_pallas.1} parent=71 // pred_check
          %p1306 = pneg %p324
        $region98: #{residual_net_forward_pallas.1} parent=71 // pred_check_branch
          %1308 = sbr.rel (%p1306) target = $region100
        $region99: #{residual_net_forward_pallas.1} parent=71 // pred_region
          %s1309 = smul.u32 4, %s28
        $region100: #{residual_net_forward_pallas.1} parent=71 // pred_fallthru
          _
      $region72: #{residual_net_forward_pallas.1} parent=5 // pred_fallthru
        _
      %p1310 = scmp.le.s32.totalorder 2, %s23
      // Predicated region
      $region101: #{residual_net_forward_pallas.1} parent=5 // pred_check
        %p1311 = pneg %p1310
      $region102: #{residual_net_forward_pallas.1} parent=5 // pred_check_branch
        %1313 = sbr.rel (%p1311) target = $region104
      $region103: #{residual_net_forward_pallas.1} parent=5 // pred_region
        %s1314 = ssub.s32 %s23, 2
        // Predicated region
        $region105: #{residual_net_forward_pallas.1} parent=103 // pred_check
          %p1315 = pneg %p330
        $region106: #{residual_net_forward_pallas.1} parent=103 // pred_check_branch
          %1317 = sbr.rel (%p1315) target = $region108
        $region107: #{residual_net_forward_pallas.1} parent=103 // pred_region
          %s1318 = smul.u32 4, %s29
          %p1319 = scmp.lt.s32.totalorder %s1318, 7
          %s1320 = scalar_select %p1319, %s1318, 7
          %s1321 = smul.addr %s1320, 8
          %s1322 = scalar_lea.vmem %s13, %s1321
        $region108: #{residual_net_forward_pallas.1} parent=103 // pred_fallthru
          _
      $region104: #{residual_net_forward_pallas.1} parent=5 // pred_fallthru
        _
    $region6: #{residual_net_forward_pallas.1} parent=1 // loop_footer
      %s27 = sadd.s32 1, %s23
    $region7: #{residual_net_forward_pallas.1} parent=1 // loop_footer_branch
      %22 = sbr.rel target = $region3
    $region8: #{residual_net_forward_pallas.1} parent=1 // loop_exit
      _
    %1323 = vsyncpa [#allocation3], 1
    %s1324 = scalar_lea.sflag [#allocation3], 1
    %1325 = vsyncpa %s1324, 1
    %1326 = vsyncpa [#allocation5], 1
    %1327 = vsyncpa [#allocation8], 1
    %1328 = vsyncpa [#allocation11], 1

</llo_original>
